<compile_context>
chip_gen: v7x
topology: tpu7x:2x2x1
jax: 0.10.0
libtpu: 0.0.40
codegen_flags: <defaults>
</compile_context>

<pallas_src>
import jax
import jax.numpy as jnp
from jax import lax
from jax.experimental import pallas as pl
from jax.experimental.pallas import tpu as pltpu

LANE = 128               # source-column chunk width = one vreg of lanes
UNROLL_MAX_CHUNKS = 4    # unroll the chunk loop up to this many chunks


def _round_up(a: int, b: int) -> int:
    return (a + b - 1) // b * b


def gather_elements_kernel(x_ref, idx_ref, o_ref):
    # x_ref:   (TM, N_pad)  source rows (gather axis on lanes)
    # idx_ref: (TM, TK)     int32 indices in [0, N)
    # o_ref:   (TM, TK)     gathered output
    tm, n_pad = x_ref.shape
    tk = idx_ref.shape[1]
    n_chunks = n_pad // LANE

    idx = idx_ref[...]
    # Single-vreg lane iota, reused for every chunk (no big 3-D iota).
    lane = lax.broadcasted_iota(jnp.int32, (1, 1, LANE), 2)

    def select_from(x_chunk, chunk_start, acc):
        # Exactly-one-hot select of this source chunk, where-chained into acc.
        # x_chunk: (TM, 128); acc: scalar 0 or (TM, TK, 128); returns (TM, TK, 128).
        hit = idx[:, :, None] == (lane + chunk_start)          # (TM, TK, 128) bool
        return jnp.where(hit, x_chunk[:, None, :], acc)

    if n_chunks <= UNROLL_MAX_CHUNKS:
        # Static slices, fully unrolled (LLO scheduler sees everything).
        acc = select_from(x_ref[:, 0:LANE], 0, jnp.zeros((), x_ref.dtype))
        for c in range(1, n_chunks):
            acc = select_from(x_ref[:, c * LANE:(c + 1) * LANE], c * LANE, acc)
    else:
        # Many chunks: bounded code size, lane-aligned dynamic slice.
        def body(c, acc):
            start = pl.multiple_of(c * LANE, LANE)
            return select_from(x_ref[:, pl.ds(start, LANE)], c * LANE, acc)

        acc = lax.fori_loop(0, n_chunks, body,
                            jnp.zeros((tm, tk, LANE), x_ref.dtype))

    # Single cross-lane (XLU) reduce at the very end (exactly one nonzero term).
    o_ref[...] = jnp.sum(acc, axis=-1).astype(o_ref.dtype)


def gather_elements(x: jax.Array, index: jax.Array) -> jax.Array:
    """torch.gather(x, 1, index) for 2-D x / index, computed in a Pallas kernel."""
    M, N = x.shape
    Mi, K = index.shape
    assert M == Mi, "index must match x along dim 0"
    index = index.astype(jnp.int32)

    # Tile sizes: small row tile keeps the (TM, TK, 128) working set bounded;
    # K tile is a 128-lane multiple so output stores are unmasked.
    TM = 8
    M_pad = _round_up(M, TM)
    N_pad = _round_up(N, LANE)
    TK = 512 if K > 512 else _round_up(K, LANE)
    K_pad = _round_up(K, TK)

    x_p = jnp.pad(x, ((0, M_pad - M), (0, N_pad - N)))
    # Padded index entries are 0 (valid); padded rows/cols are sliced off below.
    idx_p = jnp.pad(index, ((0, M_pad - M), (0, K_pad - K)))

    grid = (M_pad // TM, K_pad // TK)  # K innermost -> x row-block stays resident

    out = pl.pallas_call(
        gather_elements_kernel,
        out_shape=jax.ShapeDtypeStruct((M_pad, K_pad), x.dtype),
        grid_spec=pltpu.PrefetchScalarGridSpec(
            num_scalar_prefetch=0,
            grid=grid,
            in_specs=[
                pl.BlockSpec((TM, N_pad), lambda i, j: (i, 0)),
                pl.BlockSpec((TM, TK), lambda i, j: (i, j)),
            ],
            out_specs=pl.BlockSpec((TM, TK), lambda i, j: (i, j)),
        ),
        compiler_params=pltpu.CompilerParams(
            dimension_semantics=("parallel", "parallel"),
        ),
    )(x_p, idx_p)

    return out[:M, :K]


if __name__ == "__main__":
    key = jax.random.PRNGKey(0)

    def check(M, N, K, ksub):
        kx, ki = jax.random.split(ksub)
        x = jax.random.normal(kx, (M, N), dtype=jnp.float32)
        index = jax.random.randint(ki, (M, K), 0, N, dtype=jnp.int32)
        out = jax.block_until_ready(gather_elements(x, index))
        ref = jnp.take_along_axis(x, index, axis=1)
        assert out.shape == ref.shape and out.dtype == ref.dtype
        assert bool(jnp.all(out == ref))

    k1, k2, k3, k4 = jax.random.split(key, 4)
    check(4, 16, 8, k1)       # small, unaligned -> pad/slice path, single chunk
    check(8, 128, 128, k2)    # aligned toy shape, single chunk
    check(8, 200, 130, k3)    # multi-chunk N + padded K (unrolled where-chain)
    check(8, 704, 96, k4)     # 6 source chunks -> exercises the fori_loop path

    print("KERNEL_OK")
</pallas_src>

<mosaic_0001>
module attributes {stable_mosaic.version = 11 : i64} {
  func.func @gather_elements_kernel(%arg0: i32, %arg1: i32, %arg2: memref<8x128xf32, #tpu.memory_space<vmem>>, %arg3: memref<8x128xi32, #tpu.memory_space<vmem>>, %arg4: memref<8x128xf32, #tpu.memory_space<vmem>>) attributes {dimension_semantics = [#tpu.dimension_semantics<parallel>, #tpu.dimension_semantics<parallel>], iteration_bounds = array<i64: 1, 1>, scalar_prefetch = 0 : i64, scratch_operands = 0 : i64, tpu.core_type = #tpu.core_type<tc>, window_params = [{transform_indices = @transform_0, window_bounds = array<i64: 8, 128>}, {transform_indices = @transform_1, window_bounds = array<i64: 8, 128>}, {transform_indices = @transform_2, window_bounds = array<i64: 8, 128>}]} {
    %c0 = arith.constant 0 : index
    %c0_0 = arith.constant 0 : index
    %0 = vector.load %arg3[%c0, %c0_0] : memref<8x128xi32, #tpu.memory_space<vmem>>, vector<8x128xi32>
    %1 = tpu.iota {dimensions = array<i32: 2>} : vector<1x1x128xi32>
    %c0_1 = arith.constant 0 : index
    %c0_2 = arith.constant 0 : index
    %2 = vector.load %arg2[%c0_1, %c0_2] : memref<8x128xf32, #tpu.memory_space<vmem>>, vector<8x128xf32>
    %3 = vector.shape_cast %0 : vector<8x128xi32> to vector<8x128x1xi32>
    %c0_i32 = arith.constant 0 : i32
    %4 = vector.broadcast %c0_i32 : i32 to vector<1x1x128xi32>
    %5 = arith.addi %1, %4 : vector<1x1x128xi32>
    %6 = vector.broadcast %3 : vector<8x128x1xi32> to vector<8x128x128xi32>
    %7 = vector.broadcast %5 : vector<1x1x128xi32> to vector<8x128x128xi32>
    %8 = arith.cmpi eq, %6, %7 : vector<8x128x128xi32>
    %9 = vector.shape_cast %2 : vector<8x128xf32> to vector<8x1x128xf32>
    %cst = arith.constant 0.000000e+00 : f32
    %10 = vector.shape_cast %9 : vector<8x1x128xf32> to vector<8x1x128xf32>
    %11 = vector.broadcast %10 : vector<8x1x128xf32> to vector<8x128x128xf32>
    %12 = vector.broadcast %cst : f32 to vector<8x128x128xf32>
    %13 = arith.select %8, %11, %12 : vector<8x128x128xi1>, vector<8x128x128xf32>
    %cst_3 = arith.constant dense<0.000000e+00> : vector<8x128xf32>
    %14 = vector.multi_reduction <add>, %13, %cst_3 [2] : vector<8x128x128xf32> to vector<8x128xf32>
    %c0_4 = arith.constant 0 : index
    %c0_5 = arith.constant 0 : index
    %15 = vector.load %arg4[%c0_4, %c0_5] : memref<8x128xf32, #tpu.memory_space<vmem>>, vector<8x128xf32>
    tpu.vector_store %arg4[%c0_4, %c0_5], %14 {strides = array<i32>} : memref<8x128xf32, #tpu.memory_space<vmem>>, vector<8x128xf32>,
    return
  }
  func.func @transform_0(%arg0: i32, %arg1: i32) -> (i32, i32) {
    %c0_i32 = arith.constant 0 : i32
    %c0_i32_0 = arith.constant 0 : i32
    return %arg0, %c0_i32 : i32, i32
  }
  func.func @transform_1(%arg0: i32, %arg1: i32) -> (i32, i32) {
    %c0_i32 = arith.constant 0 : i32
    return %arg0, %arg1 : i32, i32
  }
  func.func @transform_2(%arg0: i32, %arg1: i32) -> (i32, i32) {
    %c0_i32 = arith.constant 0 : i32
    return %arg0, %arg1 : i32, i32
  }
}

</mosaic_0001>

<llo_original>
// kernel: tpu_custom_call.1
$region0: #{tpu_custom_call.1}
  #allocation0 [shape = 'u32[]', space=smem, size = 0x4, offset = 0x4, fixed_abs, tag = 'smem constant byte address 0x4 - core index']
  #allocation1 [shape = 'u32[144,128]{1,0:T(1,128)}', space=vmem, size = 0x12000, scoped, tag = 'internal scratch']
  %s0 = inlined_call_operand.hbm [shape: f32[8,128], index: 0, kind: input, shape index: {}]
  %s1 = inlined_call_operand.hbm [shape: s32[8,128], index: 1, kind: input, shape index: {}]
  %s2 = inlined_call_operand.hbm [shape: f32[8,128], index: 2, kind: output, shape index: {}]
  %s3 = sld [smem:[#allocation0]]
  $region26: #{tpu_custom_call.1} parent=0
    _
  %s5 = ssub.s32 1, %s3
  %s6 = scalar_select 0, %s5, %s3
  $region1: #{tpu_custom_call.1} parent=0
    #allocation2 [shape = 'u8[4096]{0}', space=vmem, size = 0x1000, scoped, tag = 'input window, operand 0, single buffered']
    #allocation3 [shape = 's32[1]{0}', space=sflag, size = 0x4, scoped, tag = 'scoped memory for tpu_custom_call.1']
    #allocation4 [shape = 's32[1]{0}', space=sflag, size = 0x4, scoped, tag = 'scoped memory for tpu_custom_call.1']
    #allocation5 [shape = 'u8[4096]{0}', space=vmem, size = 0x1000, scoped, tag = 'input window, operand 1, single buffered']
    #allocation6 [shape = 's32[1]{0}', space=sflag, size = 0x4, scoped, tag = 'scoped memory for tpu_custom_call.1']
    #allocation7 [shape = 'u8[4096]{0}', space=vmem, size = 0x1000, scoped, tag = 'output window, operand 0, single buffered']
    %7 = vsyncpa [#allocation3], 0
    %8 = vsyncpa [#allocation6], 0
    %9 = vsyncpa [#allocation4], 0
    // Predicated region
    $region2: #{tpu_custom_call.1} parent=1 // pred_check
      _
    $region3: #{tpu_custom_call.1} parent=1 // pred_check_branch
      %11 = sbr.rel (0) target = $region5
    $region4: #{tpu_custom_call.1} parent=1 // pred_region
      %s13 = ssub.s32 128, 128
      %14 = vsyncadd [#allocation3], %s13
      %s16 = sshll.u32 [#allocation2], 4
      %s17 = int_to_ptr.vmem [resolvable:$true] %s16
      %19 = dma.hbm_to_vmem [thread:$0]  %s0, 128, %s17, [#allocation3]
    $region5: #{tpu_custom_call.1} parent=1 // pred_fallthru
      _
    // Predicated region
    $region6: #{tpu_custom_call.1} parent=1 // pred_check
      _
    $region7: #{tpu_custom_call.1} parent=1 // pred_check_branch
      %21 = sbr.rel (0) target = $region9
    $region8: #{tpu_custom_call.1} parent=1 // pred_region
      %s23 = ssub.s32 128, 128
      %24 = vsyncadd [#allocation6], %s23
      %s26 = sshll.u32 [#allocation5], 4
      %s27 = int_to_ptr.vmem [resolvable:$true] %s26
      %29 = dma.hbm_to_vmem [thread:$0]  %s1, 128, %s27, [#allocation6]
    $region9: #{tpu_custom_call.1} parent=1 // pred_fallthru
      _
    // Predicated region
    $region10: #{tpu_custom_call.1} parent=1 // pred_check
      _
    $region11: #{tpu_custom_call.1} parent=1 // pred_check_branch
      %31 = sbr.rel (0) target = $region13
    $region12: #{tpu_custom_call.1} parent=1 // pred_region
      %32 = dma.done [#allocation3], 128
    $region13: #{tpu_custom_call.1} parent=1 // pred_fallthru
      _
    // Predicated region
    $region14: #{tpu_custom_call.1} parent=1 // pred_check
      _
    $region15: #{tpu_custom_call.1} parent=1 // pred_check_branch
      %34 = sbr.rel (0) target = $region17
    $region16: #{tpu_custom_call.1} parent=1 // pred_region
      %35 = dma.done [#allocation6], 128
    $region17: #{tpu_custom_call.1} parent=1 // pred_fallthru
      _
    %v36 = vld [vmem:[#allocation5] sm:$0xff]
    %v37 = vlaneseq
    %v38 = vand.u32 %v37, 127
    %v39 = vld [vmem:[#allocation2] sm:$0xff]
    %v40 = vlaneseq
    %v41 = vshrl.u32 %v40, 7
    %v42 = vsub.s32 0, %v41
    %v43 = vrot.slane %v36, %v42
    %45 = vbcast.lane.b32.xlu0 %v43, 256
    %v46 = vpop.permute.xlu0 %45
    %s48 = sor.u32 256, 8
    %49 = vbcast.lane.b32.xlu0 %v43, %s48
    %v50 = vpop.permute.xlu0 %49
    %s52 = sor.u32 256, 16
    %53 = vbcast.lane.b32.xlu0 %v43, %s52
    %v54 = vpop.permute.xlu0 %53
    %s56 = sor.u32 256, 24
    %57 = vbcast.lane.b32.xlu0 %v43, %s56
    %v58 = vpop.permute.xlu0 %57
    %s60 = sor.u32 256, 32
    %61 = vbcast.lane.b32.xlu0 %v43, %s60
    %v62 = vpop.permute.xlu0 %61
    %s64 = sor.u32 256, 40
    %65 = vbcast.lane.b32.xlu0 %v43, %s64
    %v66 = vpop.permute.xlu0 %65
    %s68 = sor.u32 256, 48
    %69 = vbcast.lane.b32.xlu0 %v43, %s68
    %v70 = vpop.permute.xlu0 %69
    %s72 = sor.u32 256, 56
    %73 = vbcast.lane.b32.xlu0 %v43, %s72
    %v74 = vpop.permute.xlu0 %73
    %s76 = sor.u32 256, 64
    %77 = vbcast.lane.b32.xlu0 %v43, %s76
    %v78 = vpop.permute.xlu0 %77
    %s80 = sor.u32 256, 72
    %81 = vbcast.lane.b32.xlu0 %v43, %s80
    %v82 = vpop.permute.xlu0 %81
    %s84 = sor.u32 256, 80
    %85 = vbcast.lane.b32.xlu0 %v43, %s84
    %v86 = vpop.permute.xlu0 %85
    %s88 = sor.u32 256, 88
    %89 = vbcast.lane.b32.xlu0 %v43, %s88
    %v90 = vpop.permute.xlu0 %89
    %s92 = sor.u32 256, 96
    %93 = vbcast.lane.b32.xlu0 %v43, %s92
    %v94 = vpop.permute.xlu0 %93
    %s96 = sor.u32 256, 104
    %97 = vbcast.lane.b32.xlu0 %v43, %s96
    %v98 = vpop.permute.xlu0 %97
    %s100 = sor.u32 256, 112
    %101 = vbcast.lane.b32.xlu0 %v43, %s100
    %v102 = vpop.permute.xlu0 %101
    %s104 = sor.u32 256, 120
    %105 = vbcast.lane.b32.xlu0 %v43, %s104
    %v106 = vpop.permute.xlu0 %105
    %v107 = vlaneseq
    %v108 = vshrl.u32 %v107, 7
    %v109 = vsub.s32 1, %v108
    %v110 = vrot.slane %v36, %v109
    %112 = vbcast.lane.b32.xlu0 %v110, 256
    %v113 = vpop.permute.xlu0 %112
    %s115 = sor.u32 256, 8
    %116 = vbcast.lane.b32.xlu0 %v110, %s115
    %v117 = vpop.permute.xlu0 %116
    %s119 = sor.u32 256, 16
    %120 = vbcast.lane.b32.xlu0 %v110, %s119
    %v121 = vpop.permute.xlu0 %120
    %s123 = sor.u32 256, 24
    %124 = vbcast.lane.b32.xlu0 %v110, %s123
    %v125 = vpop.permute.xlu0 %124
    %s127 = sor.u32 256, 32
    %128 = vbcast.lane.b32.xlu0 %v110, %s127
    %v129 = vpop.permute.xlu0 %128
    %s131 = sor.u32 256, 40
    %132 = vbcast.lane.b32.xlu0 %v110, %s131
    %v133 = vpop.permute.xlu0 %132
    %s135 = sor.u32 256, 48
    %136 = vbcast.lane.b32.xlu0 %v110, %s135
    %v137 = vpop.permute.xlu0 %136
    %s139 = sor.u32 256, 56
    %140 = vbcast.lane.b32.xlu0 %v110, %s139
    %v141 = vpop.permute.xlu0 %140
    %s143 = sor.u32 256, 64
    %144 = vbcast.lane.b32.xlu0 %v110, %s143
    %v145 = vpop.permute.xlu0 %144
    %s147 = sor.u32 256, 72
    %148 = vbcast.lane.b32.xlu0 %v110, %s147
    %v149 = vpop.permute.xlu0 %148
    %s151 = sor.u32 256, 80
    %152 = vbcast.lane.b32.xlu0 %v110, %s151
    %v153 = vpop.permute.xlu0 %152
    %s155 = sor.u32 256, 88
    %156 = vbcast.lane.b32.xlu0 %v110, %s155
    %v157 = vpop.permute.xlu0 %156
    %s159 = sor.u32 256, 96
    %160 = vbcast.lane.b32.xlu0 %v110, %s159
    %v161 = vpop.permute.xlu0 %160
    %s163 = sor.u32 256, 104
    %164 = vbcast.lane.b32.xlu0 %v110, %s163
    %v165 = vpop.permute.xlu0 %164
    %s167 = sor.u32 256, 112
    %168 = vbcast.lane.b32.xlu0 %v110, %s167
    %v169 = vpop.permute.xlu0 %168
    %s171 = sor.u32 256, 120
    %172 = vbcast.lane.b32.xlu0 %v110, %s171
    %v173 = vpop.permute.xlu0 %172
    %v174 = vlaneseq
    %v175 = vshrl.u32 %v174, 7
    %v176 = vsub.s32 2, %v175
    %v177 = vrot.slane %v36, %v176
    %179 = vbcast.lane.b32.xlu0 %v177, 256
    %v180 = vpop.permute.xlu0 %179
    %s182 = sor.u32 256, 8
    %183 = vbcast.lane.b32.xlu0 %v177, %s182
    %v184 = vpop.permute.xlu0 %183
    %s186 = sor.u32 256, 16
    %187 = vbcast.lane.b32.xlu0 %v177, %s186
    %v188 = vpop.permute.xlu0 %187
    %s190 = sor.u32 256, 24
    %191 = vbcast.lane.b32.xlu0 %v177, %s190
    %v192 = vpop.permute.xlu0 %191
    %s194 = sor.u32 256, 32
    %195 = vbcast.lane.b32.xlu0 %v177, %s194
    %v196 = vpop.permute.xlu0 %195
    %s198 = sor.u32 256, 40
    %199 = vbcast.lane.b32.xlu0 %v177, %s198
    %v200 = vpop.permute.xlu0 %199
    %s202 = sor.u32 256, 48
    %203 = vbcast.lane.b32.xlu0 %v177, %s202
    %v204 = vpop.permute.xlu0 %203
    %s206 = sor.u32 256, 56
    %207 = vbcast.lane.b32.xlu0 %v177, %s206
    %v208 = vpop.permute.xlu0 %207
    %s210 = sor.u32 256, 64
    %211 = vbcast.lane.b32.xlu0 %v177, %s210
    %v212 = vpop.permute.xlu0 %211
    %s214 = sor.u32 256, 72
    %215 = vbcast.lane.b32.xlu0 %v177, %s214
    %v216 = vpop.permute.xlu0 %215
    %s218 = sor.u32 256, 80
    %219 = vbcast.lane.b32.xlu0 %v177, %s218
    %v220 = vpop.permute.xlu0 %219
    %s222 = sor.u32 256, 88
    %223 = vbcast.lane.b32.xlu0 %v177, %s222
    %v224 = vpop.permute.xlu0 %223
    %s226 = sor.u32 256, 96
    %227 = vbcast.lane.b32.xlu0 %v177, %s226
    %v228 = vpop.permute.xlu0 %227
    %s230 = sor.u32 256, 104
    %231 = vbcast.lane.b32.xlu0 %v177, %s230
    %v232 = vpop.permute.xlu0 %231
    %s234 = sor.u32 256, 112
    %235 = vbcast.lane.b32.xlu0 %v177, %s234
    %v236 = vpop.permute.xlu0 %235
    %s238 = sor.u32 256, 120
    %239 = vbcast.lane.b32.xlu0 %v177, %s238
    %v240 = vpop.permute.xlu0 %239
    %v241 = vlaneseq
    %v242 = vshrl.u32 %v241, 7
    %v243 = vsub.s32 3, %v242
    %v244 = vrot.slane %v36, %v243
    %246 = vbcast.lane.b32.xlu0 %v244, 256
    %v247 = vpop.permute.xlu0 %246
    %s249 = sor.u32 256, 8
    %250 = vbcast.lane.b32.xlu0 %v244, %s249
    %v251 = vpop.permute.xlu0 %250
    %s253 = sor.u32 256, 16
    %254 = vbcast.lane.b32.xlu0 %v244, %s253
    %v255 = vpop.permute.xlu0 %254
    %s257 = sor.u32 256, 24
    %258 = vbcast.lane.b32.xlu0 %v244, %s257
    %v259 = vpop.permute.xlu0 %258
    %s261 = sor.u32 256, 32
    %262 = vbcast.lane.b32.xlu0 %v244, %s261
    %v263 = vpop.permute.xlu0 %262
    %s265 = sor.u32 256, 40
    %266 = vbcast.lane.b32.xlu0 %v244, %s265
    %v267 = vpop.permute.xlu0 %266
    %s269 = sor.u32 256, 48
    %270 = vbcast.lane.b32.xlu0 %v244, %s269
    %v271 = vpop.permute.xlu0 %270
    %s273 = sor.u32 256, 56
    %274 = vbcast.lane.b32.xlu0 %v244, %s273
    %v275 = vpop.permute.xlu0 %274
    %s277 = sor.u32 256, 64
    %278 = vbcast.lane.b32.xlu0 %v244, %s277
    %v279 = vpop.permute.xlu0 %278
    %s281 = sor.u32 256, 72
    %282 = vbcast.lane.b32.xlu0 %v244, %s281
    %v283 = vpop.permute.xlu0 %282
    %s285 = sor.u32 256, 80
    %286 = vbcast.lane.b32.xlu0 %v244, %s285
    %v287 = vpop.permute.xlu0 %286
    %s289 = sor.u32 256, 88
    %290 = vbcast.lane.b32.xlu0 %v244, %s289
    %v291 = vpop.permute.xlu0 %290
    %s293 = sor.u32 256, 96
    %294 = vbcast.lane.b32.xlu0 %v244, %s293
    %v295 = vpop.permute.xlu0 %294
    %s297 = sor.u32 256, 104
    %298 = vbcast.lane.b32.xlu0 %v244, %s297
    %v299 = vpop.permute.xlu0 %298
    %s301 = sor.u32 256, 112
    %302 = vbcast.lane.b32.xlu0 %v244, %s301
    %v303 = vpop.permute.xlu0 %302
    %s305 = sor.u32 256, 120
    %306 = vbcast.lane.b32.xlu0 %v244, %s305
    %v307 = vpop.permute.xlu0 %306
    %v308 = vlaneseq
    %v309 = vshrl.u32 %v308, 7
    %v310 = vsub.s32 4, %v309
    %v311 = vrot.slane %v36, %v310
    %313 = vbcast.lane.b32.xlu0 %v311, 256
    %v314 = vpop.permute.xlu0 %313
    %s316 = sor.u32 256, 8
    %317 = vbcast.lane.b32.xlu0 %v311, %s316
    %v318 = vpop.permute.xlu0 %317
    %s320 = sor.u32 256, 16
    %321 = vbcast.lane.b32.xlu0 %v311, %s320
    %v322 = vpop.permute.xlu0 %321
    %s324 = sor.u32 256, 24
    %325 = vbcast.lane.b32.xlu0 %v311, %s324
    %v326 = vpop.permute.xlu0 %325
    %s328 = sor.u32 256, 32
    %329 = vbcast.lane.b32.xlu0 %v311, %s328
    %v330 = vpop.permute.xlu0 %329
    %s332 = sor.u32 256, 40
    %333 = vbcast.lane.b32.xlu0 %v311, %s332
    %v334 = vpop.permute.xlu0 %333
    %s336 = sor.u32 256, 48
    %337 = vbcast.lane.b32.xlu0 %v311, %s336
    %v338 = vpop.permute.xlu0 %337
    %s340 = sor.u32 256, 56
    %341 = vbcast.lane.b32.xlu0 %v311, %s340
    %v342 = vpop.permute.xlu0 %341
    %s344 = sor.u32 256, 64
    %345 = vbcast.lane.b32.xlu0 %v311, %s344
    %v346 = vpop.permute.xlu0 %345
    %s348 = sor.u32 256, 72
    %349 = vbcast.lane.b32.xlu0 %v311, %s348
    %v350 = vpop.permute.xlu0 %349
    %s352 = sor.u32 256, 80
    %353 = vbcast.lane.b32.xlu0 %v311, %s352
    %v354 = vpop.permute.xlu0 %353
    %s356 = sor.u32 256, 88
    %357 = vbcast.lane.b32.xlu0 %v311, %s356
    %v358 = vpop.permute.xlu0 %357
    %s360 = sor.u32 256, 96
    %361 = vbcast.lane.b32.xlu0 %v311, %s360
    %v362 = vpop.permute.xlu0 %361
    %s364 = sor.u32 256, 104
    %365 = vbcast.lane.b32.xlu0 %v311, %s364
    %v366 = vpop.permute.xlu0 %365
    %s368 = sor.u32 256, 112
    %369 = vbcast.lane.b32.xlu0 %v311, %s368
    %v370 = vpop.permute.xlu0 %369
    %s372 = sor.u32 256, 120
    %373 = vbcast.lane.b32.xlu0 %v311, %s372
    %v374 = vpop.permute.xlu0 %373
    %v375 = vlaneseq
    %v376 = vshrl.u32 %v375, 7
    %v377 = vsub.s32 5, %v376
    %v378 = vrot.slane %v36, %v377
    %380 = vbcast.lane.b32.xlu0 %v378, 256
    %v381 = vpop.permute.xlu0 %380
    %s383 = sor.u32 256, 8
    %384 = vbcast.lane.b32.xlu0 %v378, %s383
    %v385 = vpop.permute.xlu0 %384
    %s387 = sor.u32 256, 16
    %388 = vbcast.lane.b32.xlu0 %v378, %s387
    %v389 = vpop.permute.xlu0 %388
    %s391 = sor.u32 256, 24
    %392 = vbcast.lane.b32.xlu0 %v378, %s391
    %v393 = vpop.permute.xlu0 %392
    %s395 = sor.u32 256, 32
    %396 = vbcast.lane.b32.xlu0 %v378, %s395
    %v397 = vpop.permute.xlu0 %396
    %s399 = sor.u32 256, 40
    %400 = vbcast.lane.b32.xlu0 %v378, %s399
    %v401 = vpop.permute.xlu0 %400
    %s403 = sor.u32 256, 48
    %404 = vbcast.lane.b32.xlu0 %v378, %s403
    %v405 = vpop.permute.xlu0 %404
    %s407 = sor.u32 256, 56
    %408 = vbcast.lane.b32.xlu0 %v378, %s407
    %v409 = vpop.permute.xlu0 %408
    %s411 = sor.u32 256, 64
    %412 = vbcast.lane.b32.xlu0 %v378, %s411
    %v413 = vpop.permute.xlu0 %412
    %s415 = sor.u32 256, 72
    %416 = vbcast.lane.b32.xlu0 %v378, %s415
    %v417 = vpop.permute.xlu0 %416
    %s419 = sor.u32 256, 80
    %420 = vbcast.lane.b32.xlu0 %v378, %s419
    %v421 = vpop.permute.xlu0 %420
    %s423 = sor.u32 256, 88
    %424 = vbcast.lane.b32.xlu0 %v378, %s423
    %v425 = vpop.permute.xlu0 %424
    %s427 = sor.u32 256, 96
    %428 = vbcast.lane.b32.xlu0 %v378, %s427
    %v429 = vpop.permute.xlu0 %428
    %s431 = sor.u32 256, 104
    %432 = vbcast.lane.b32.xlu0 %v378, %s431
    %v433 = vpop.permute.xlu0 %432
    %s435 = sor.u32 256, 112
    %436 = vbcast.lane.b32.xlu0 %v378, %s435
    %v437 = vpop.permute.xlu0 %436
    %s439 = sor.u32 256, 120
    %440 = vbcast.lane.b32.xlu0 %v378, %s439
    %v441 = vpop.permute.xlu0 %440
    %v442 = vlaneseq
    %v443 = vshrl.u32 %v442, 7
    %v444 = vsub.s32 6, %v443
    %v445 = vrot.slane %v36, %v444
    %447 = vbcast.lane.b32.xlu0 %v445, 256
    %v448 = vpop.permute.xlu0 %447
    %s450 = sor.u32 256, 8
    %451 = vbcast.lane.b32.xlu0 %v445, %s450
    %v452 = vpop.permute.xlu0 %451
    %s454 = sor.u32 256, 16
    %455 = vbcast.lane.b32.xlu0 %v445, %s454
    %v456 = vpop.permute.xlu0 %455
    %s458 = sor.u32 256, 24
    %459 = vbcast.lane.b32.xlu0 %v445, %s458
    %v460 = vpop.permute.xlu0 %459
    %s462 = sor.u32 256, 32
    %463 = vbcast.lane.b32.xlu0 %v445, %s462
    %v464 = vpop.permute.xlu0 %463
    %s466 = sor.u32 256, 40
    %467 = vbcast.lane.b32.xlu0 %v445, %s466
    %v468 = vpop.permute.xlu0 %467
    %s470 = sor.u32 256, 48
    %471 = vbcast.lane.b32.xlu0 %v445, %s470
    %v472 = vpop.permute.xlu0 %471
    %s474 = sor.u32 256, 56
    %475 = vbcast.lane.b32.xlu0 %v445, %s474
    %v476 = vpop.permute.xlu0 %475
    %s478 = sor.u32 256, 64
    %479 = vbcast.lane.b32.xlu0 %v445, %s478
    %v480 = vpop.permute.xlu0 %479
    %s482 = sor.u32 256, 72
    %483 = vbcast.lane.b32.xlu0 %v445, %s482
    %v484 = vpop.permute.xlu0 %483
    %s486 = sor.u32 256, 80
    %487 = vbcast.lane.b32.xlu0 %v445, %s486
    %v488 = vpop.permute.xlu0 %487
    %s490 = sor.u32 256, 88
    %491 = vbcast.lane.b32.xlu0 %v445, %s490
    %v492 = vpop.permute.xlu0 %491
    %s494 = sor.u32 256, 96
    %495 = vbcast.lane.b32.xlu0 %v445, %s494
    %v496 = vpop.permute.xlu0 %495
    %s498 = sor.u32 256, 104
    %499 = vbcast.lane.b32.xlu0 %v445, %s498
    %v500 = vpop.permute.xlu0 %499
    %s502 = sor.u32 256, 112
    %503 = vbcast.lane.b32.xlu0 %v445, %s502
    %v504 = vpop.permute.xlu0 %503
    %s506 = sor.u32 256, 120
    %507 = vbcast.lane.b32.xlu0 %v445, %s506
    %v508 = vpop.permute.xlu0 %507
    %v509 = vlaneseq
    %v510 = vshrl.u32 %v509, 7
    %v511 = vsub.s32 7, %v510
    %v512 = vrot.slane %v36, %v511
    %514 = vbcast.lane.b32.xlu0 %v512, 256
    %v515 = vpop.permute.xlu0 %514
    %s517 = sor.u32 256, 8
    %518 = vbcast.lane.b32.xlu0 %v512, %s517
    %v519 = vpop.permute.xlu0 %518
    %s521 = sor.u32 256, 16
    %522 = vbcast.lane.b32.xlu0 %v512, %s521
    %v523 = vpop.permute.xlu0 %522
    %s525 = sor.u32 256, 24
    %526 = vbcast.lane.b32.xlu0 %v512, %s525
    %v527 = vpop.permute.xlu0 %526
    %s529 = sor.u32 256, 32
    %530 = vbcast.lane.b32.xlu0 %v512, %s529
    %v531 = vpop.permute.xlu0 %530
    %s533 = sor.u32 256, 40
    %534 = vbcast.lane.b32.xlu0 %v512, %s533
    %v535 = vpop.permute.xlu0 %534
    %s537 = sor.u32 256, 48
    %538 = vbcast.lane.b32.xlu0 %v512, %s537
    %v539 = vpop.permute.xlu0 %538
    %s541 = sor.u32 256, 56
    %542 = vbcast.lane.b32.xlu0 %v512, %s541
    %v543 = vpop.permute.xlu0 %542
    %s545 = sor.u32 256, 64
    %546 = vbcast.lane.b32.xlu0 %v512, %s545
    %v547 = vpop.permute.xlu0 %546
    %s549 = sor.u32 256, 72
    %550 = vbcast.lane.b32.xlu0 %v512, %s549
    %v551 = vpop.permute.xlu0 %550
    %s553 = sor.u32 256, 80
    %554 = vbcast.lane.b32.xlu0 %v512, %s553
    %v555 = vpop.permute.xlu0 %554
    %s557 = sor.u32 256, 88
    %558 = vbcast.lane.b32.xlu0 %v512, %s557
    %v559 = vpop.permute.xlu0 %558
    %s561 = sor.u32 256, 96
    %562 = vbcast.lane.b32.xlu0 %v512, %s561
    %v563 = vpop.permute.xlu0 %562
    %s565 = sor.u32 256, 104
    %566 = vbcast.lane.b32.xlu0 %v512, %s565
    %v567 = vpop.permute.xlu0 %566
    %s569 = sor.u32 256, 112
    %570 = vbcast.lane.b32.xlu0 %v512, %s569
    %v571 = vpop.permute.xlu0 %570
    %s573 = sor.u32 256, 120
    %574 = vbcast.lane.b32.xlu0 %v512, %s573
    %v575 = vpop.permute.xlu0 %574
    %vm576 = vcmp.eq.s32.totalorder %v46, %v38
    %vm577 = vcmp.eq.s32.totalorder %v50, %v38
    %vm578 = vcmp.eq.s32.totalorder %v54, %v38
    %vm579 = vcmp.eq.s32.totalorder %v58, %v38
    %vm580 = vcmp.eq.s32.totalorder %v62, %v38
    %vm581 = vcmp.eq.s32.totalorder %v66, %v38
    %vm582 = vcmp.eq.s32.totalorder %v70, %v38
    %vm583 = vcmp.eq.s32.totalorder %v74, %v38
    %vm584 = vcmp.eq.s32.totalorder %v78, %v38
    %vm585 = vcmp.eq.s32.totalorder %v82, %v38
    %vm586 = vcmp.eq.s32.totalorder %v86, %v38
    %vm587 = vcmp.eq.s32.totalorder %v90, %v38
    %vm588 = vcmp.eq.s32.totalorder %v94, %v38
    %vm589 = vcmp.eq.s32.totalorder %v98, %v38
    %vm590 = vcmp.eq.s32.totalorder %v102, %v38
    %vm591 = vcmp.eq.s32.totalorder %v106, %v38
    %vm592 = vcmp.eq.s32.totalorder %v113, %v38
    %vm593 = vcmp.eq.s32.totalorder %v117, %v38
    %vm594 = vcmp.eq.s32.totalorder %v121, %v38
    %vm595 = vcmp.eq.s32.totalorder %v125, %v38
    %vm596 = vcmp.eq.s32.totalorder %v129, %v38
    %vm597 = vcmp.eq.s32.totalorder %v133, %v38
    %vm598 = vcmp.eq.s32.totalorder %v137, %v38
    %vm599 = vcmp.eq.s32.totalorder %v141, %v38
    %vm600 = vcmp.eq.s32.totalorder %v145, %v38
    %vm601 = vcmp.eq.s32.totalorder %v149, %v38
    %vm602 = vcmp.eq.s32.totalorder %v153, %v38
    %vm603 = vcmp.eq.s32.totalorder %v157, %v38
    %vm604 = vcmp.eq.s32.totalorder %v161, %v38
    %vm605 = vcmp.eq.s32.totalorder %v165, %v38
    %vm606 = vcmp.eq.s32.totalorder %v169, %v38
    %vm607 = vcmp.eq.s32.totalorder %v173, %v38
    %vm608 = vcmp.eq.s32.totalorder %v180, %v38
    %vm609 = vcmp.eq.s32.totalorder %v184, %v38
    %vm610 = vcmp.eq.s32.totalorder %v188, %v38
    %vm611 = vcmp.eq.s32.totalorder %v192, %v38
    %vm612 = vcmp.eq.s32.totalorder %v196, %v38
    %vm613 = vcmp.eq.s32.totalorder %v200, %v38
    %vm614 = vcmp.eq.s32.totalorder %v204, %v38
    %vm615 = vcmp.eq.s32.totalorder %v208, %v38
    %vm616 = vcmp.eq.s32.totalorder %v212, %v38
    %vm617 = vcmp.eq.s32.totalorder %v216, %v38
    %vm618 = vcmp.eq.s32.totalorder %v220, %v38
    %vm619 = vcmp.eq.s32.totalorder %v224, %v38
    %vm620 = vcmp.eq.s32.totalorder %v228, %v38
    %vm621 = vcmp.eq.s32.totalorder %v232, %v38
    %vm622 = vcmp.eq.s32.totalorder %v236, %v38
    %vm623 = vcmp.eq.s32.totalorder %v240, %v38
    %vm624 = vcmp.eq.s32.totalorder %v247, %v38
    %vm625 = vcmp.eq.s32.totalorder %v251, %v38
    %vm626 = vcmp.eq.s32.totalorder %v255, %v38
    %vm627 = vcmp.eq.s32.totalorder %v259, %v38
    %vm628 = vcmp.eq.s32.totalorder %v263, %v38
    %vm629 = vcmp.eq.s32.totalorder %v267, %v38
    %vm630 = vcmp.eq.s32.totalorder %v271, %v38
    %vm631 = vcmp.eq.s32.totalorder %v275, %v38
    %vm632 = vcmp.eq.s32.totalorder %v279, %v38
    %vm633 = vcmp.eq.s32.totalorder %v283, %v38
    %vm634 = vcmp.eq.s32.totalorder %v287, %v38
    %vm635 = vcmp.eq.s32.totalorder %v291, %v38
    %vm636 = vcmp.eq.s32.totalorder %v295, %v38
    %vm637 = vcmp.eq.s32.totalorder %v299, %v38
    %vm638 = vcmp.eq.s32.totalorder %v303, %v38
    %vm639 = vcmp.eq.s32.totalorder %v307, %v38
    %vm640 = vcmp.eq.s32.totalorder %v314, %v38
    %vm641 = vcmp.eq.s32.totalorder %v318, %v38
    %vm642 = vcmp.eq.s32.totalorder %v322, %v38
    %vm643 = vcmp.eq.s32.totalorder %v326, %v38
    %vm644 = vcmp.eq.s32.totalorder %v330, %v38
    %vm645 = vcmp.eq.s32.totalorder %v334, %v38
    %vm646 = vcmp.eq.s32.totalorder %v338, %v38
    %vm647 = vcmp.eq.s32.totalorder %v342, %v38
    %vm648 = vcmp.eq.s32.totalorder %v346, %v38
    %vm649 = vcmp.eq.s32.totalorder %v350, %v38
    %vm650 = vcmp.eq.s32.totalorder %v354, %v38
    %vm651 = vcmp.eq.s32.totalorder %v358, %v38
    %vm652 = vcmp.eq.s32.totalorder %v362, %v38
    %vm653 = vcmp.eq.s32.totalorder %v366, %v38
    %vm654 = vcmp.eq.s32.totalorder %v370, %v38
    %vm655 = vcmp.eq.s32.totalorder %v374, %v38
    %vm656 = vcmp.eq.s32.totalorder %v381, %v38
    %vm657 = vcmp.eq.s32.totalorder %v385, %v38
    %vm658 = vcmp.eq.s32.totalorder %v389, %v38
    %vm659 = vcmp.eq.s32.totalorder %v393, %v38
    %vm660 = vcmp.eq.s32.totalorder %v397, %v38
    %vm661 = vcmp.eq.s32.totalorder %v401, %v38
    %vm662 = vcmp.eq.s32.totalorder %v405, %v38
    %vm663 = vcmp.eq.s32.totalorder %v409, %v38
    %vm664 = vcmp.eq.s32.totalorder %v413, %v38
    %vm665 = vcmp.eq.s32.totalorder %v417, %v38
    %vm666 = vcmp.eq.s32.totalorder %v421, %v38
    %vm667 = vcmp.eq.s32.totalorder %v425, %v38
    %vm668 = vcmp.eq.s32.totalorder %v429, %v38
    %vm669 = vcmp.eq.s32.totalorder %v433, %v38
    %vm670 = vcmp.eq.s32.totalorder %v437, %v38
    %vm671 = vcmp.eq.s32.totalorder %v441, %v38
    %vm672 = vcmp.eq.s32.totalorder %v448, %v38
    %vm673 = vcmp.eq.s32.totalorder %v452, %v38
    %vm674 = vcmp.eq.s32.totalorder %v456, %v38
    %vm675 = vcmp.eq.s32.totalorder %v460, %v38
    %vm676 = vcmp.eq.s32.totalorder %v464, %v38
    %vm677 = vcmp.eq.s32.totalorder %v468, %v38
    %vm678 = vcmp.eq.s32.totalorder %v472, %v38
    %vm679 = vcmp.eq.s32.totalorder %v476, %v38
    %vm680 = vcmp.eq.s32.totalorder %v480, %v38
    %vm681 = vcmp.eq.s32.totalorder %v484, %v38
    %vm682 = vcmp.eq.s32.totalorder %v488, %v38
    %vm683 = vcmp.eq.s32.totalorder %v492, %v38
    %vm684 = vcmp.eq.s32.totalorder %v496, %v38
    %vm685 = vcmp.eq.s32.totalorder %v500, %v38
    %vm686 = vcmp.eq.s32.totalorder %v504, %v38
    %vm687 = vcmp.eq.s32.totalorder %v508, %v38
    %vm688 = vcmp.eq.s32.totalorder %v515, %v38
    %vm689 = vcmp.eq.s32.totalorder %v519, %v38
    %vm690 = vcmp.eq.s32.totalorder %v523, %v38
    %vm691 = vcmp.eq.s32.totalorder %v527, %v38
    %vm692 = vcmp.eq.s32.totalorder %v531, %v38
    %vm693 = vcmp.eq.s32.totalorder %v535, %v38
    %vm694 = vcmp.eq.s32.totalorder %v539, %v38
    %vm695 = vcmp.eq.s32.totalorder %v543, %v38
    %vm696 = vcmp.eq.s32.totalorder %v547, %v38
    %vm697 = vcmp.eq.s32.totalorder %v551, %v38
    %vm698 = vcmp.eq.s32.totalorder %v555, %v38
    %vm699 = vcmp.eq.s32.totalorder %v559, %v38
    %vm700 = vcmp.eq.s32.totalorder %v563, %v38
    %vm701 = vcmp.eq.s32.totalorder %v567, %v38
    %vm702 = vcmp.eq.s32.totalorder %v571, %v38
    %vm703 = vcmp.eq.s32.totalorder %v575, %v38
    %v705 = vcombine.high %v39, %v39
    %v707 = vunpack.c.l.s4 1966171168
    %v708 = vunpack.c.0.s8 %v707
    %v709 = vlaneseq
    %v710 = vshrl.u32 %v709, 7
    %v711 = vsub.s32 %v708, %v710
    %v712 = vrot.slane %v39, %v711
    %v714 = vunpack.c.l.s4 1966171168
    %v715 = vunpack.c.0.s8 %v714
    %v716 = vlaneseq
    %v717 = vshrl.u32 %v716, 7
    %v718 = vsub.s32 %v715, %v717
    %v719 = vrot.slane %v705, %v718
    %v720 = vcombine.high %v712, %v712
    %v721 = vcombine.high %v719, %v719
    %v723 = vunpack.c.l.s4 1966171168
    %v724 = vunpack.c.0.s8 %v723
    %v725 = vlaneseq
    %v726 = vshrl.u32 %v725, 7
    %v727 = vsub.s32 %v724, %v726
    %v728 = vrot.slane %v712, %v727
    %v730 = vunpack.c.l.s4 1966171168
    %v731 = vunpack.c.0.s8 %v730
    %v732 = vlaneseq
    %v733 = vshrl.u32 %v732, 7
    %v734 = vsub.s32 %v731, %v733
    %v735 = vrot.slane %v719, %v734
    %v737 = vunpack.c.l.s4 1966171168
    %v738 = vunpack.c.0.s8 %v737
    %v739 = vlaneseq
    %v740 = vshrl.u32 %v739, 7
    %v741 = vsub.s32 %v738, %v740
    %v742 = vrot.slane %v720, %v741
    %v744 = vunpack.c.l.s4 1966171168
    %v745 = vunpack.c.0.s8 %v744
    %v746 = vlaneseq
    %v747 = vshrl.u32 %v746, 7
    %v748 = vsub.s32 %v745, %v747
    %v749 = vrot.slane %v721, %v748
    %v750 = vcombine.high %v728, %v728
    %v751 = vcombine.high %v735, %v735
    %v752 = vcombine.high %v742, %v742
    %v753 = vcombine.high %v749, %v749
    %v754 = vlaneseq
    %v755 = vshrl.u32 %v754, 7
    %v756 = vsub.s32 0, %v755
    %v757 = vrot.slane %v728, %v756
    %v758 = vlaneseq
    %v759 = vshrl.u32 %v758, 7
    %v760 = vsub.s32 0, %v759
    %v761 = vrot.slane %v742, %v760
    %v762 = vlaneseq
    %v763 = vshrl.u32 %v762, 7
    %v764 = vsub.s32 0, %v763
    %v765 = vrot.slane %v750, %v764
    %v766 = vlaneseq
    %v767 = vshrl.u32 %v766, 7
    %v768 = vsub.s32 0, %v767
    %v769 = vrot.slane %v752, %v768
    %v770 = vlaneseq
    %v771 = vshrl.u32 %v770, 7
    %v772 = vsub.s32 0, %v771
    %v773 = vrot.slane %v735, %v772
    %v774 = vlaneseq
    %v775 = vshrl.u32 %v774, 7
    %v776 = vsub.s32 0, %v775
    %v777 = vrot.slane %v749, %v776
    %v778 = vlaneseq
    %v779 = vshrl.u32 %v778, 7
    %v780 = vsub.s32 0, %v779
    %v781 = vrot.slane %v751, %v780
    %v782 = vlaneseq
    %v783 = vshrl.u32 %v782, 7
    %v784 = vsub.s32 0, %v783
    %v785 = vrot.slane %v753, %v784
    %v794 = vsel %vm576, %v757, 0.0
    %v795 = vsel %vm577, %v757, 0.0
    %v796 = vsel %vm578, %v757, 0.0
    %v797 = vsel %vm579, %v757, 0.0
    %v798 = vsel %vm580, %v757, 0.0
    %v799 = vsel %vm581, %v757, 0.0
    %v800 = vsel %vm582, %v757, 0.0
    %v801 = vsel %vm583, %v757, 0.0
    %v802 = vsel %vm584, %v757, 0.0
    %v803 = vsel %vm585, %v757, 0.0
    %v804 = vsel %vm586, %v757, 0.0
    %v805 = vsel %vm587, %v757, 0.0
    %v806 = vsel %vm588, %v757, 0.0
    %v807 = vsel %vm589, %v757, 0.0
    %v808 = vsel %vm590, %v757, 0.0
    %v809 = vsel %vm591, %v757, 0.0
    %v810 = vsel %vm592, %v761, 0.0
    %v811 = vsel %vm593, %v761, 0.0
    %v812 = vsel %vm594, %v761, 0.0
    %v813 = vsel %vm595, %v761, 0.0
    %v814 = vsel %vm596, %v761, 0.0
    %v815 = vsel %vm597, %v761, 0.0
    %v816 = vsel %vm598, %v761, 0.0
    %v817 = vsel %vm599, %v761, 0.0
    %v818 = vsel %vm600, %v761, 0.0
    %v819 = vsel %vm601, %v761, 0.0
    %v820 = vsel %vm602, %v761, 0.0
    %v821 = vsel %vm603, %v761, 0.0
    %v822 = vsel %vm604, %v761, 0.0
    %v823 = vsel %vm605, %v761, 0.0
    %v824 = vsel %vm606, %v761, 0.0
    %v825 = vsel %vm607, %v761, 0.0
    %v826 = vsel %vm608, %v765, 0.0
    %v827 = vsel %vm609, %v765, 0.0
    %v828 = vsel %vm610, %v765, 0.0
    %v829 = vsel %vm611, %v765, 0.0
    %v830 = vsel %vm612, %v765, 0.0
    %v831 = vsel %vm613, %v765, 0.0
    %v832 = vsel %vm614, %v765, 0.0
    %v833 = vsel %vm615, %v765, 0.0
    %v834 = vsel %vm616, %v765, 0.0
    %v835 = vsel %vm617, %v765, 0.0
    %v836 = vsel %vm618, %v765, 0.0
    %v837 = vsel %vm619, %v765, 0.0
    %v838 = vsel %vm620, %v765, 0.0
    %v839 = vsel %vm621, %v765, 0.0
    %v840 = vsel %vm622, %v765, 0.0
    %v841 = vsel %vm623, %v765, 0.0
    %v842 = vsel %vm624, %v769, 0.0
    %v843 = vsel %vm625, %v769, 0.0
    %v844 = vsel %vm626, %v769, 0.0
    %v845 = vsel %vm627, %v769, 0.0
    %v846 = vsel %vm628, %v769, 0.0
    %v847 = vsel %vm629, %v769, 0.0
    %v848 = vsel %vm630, %v769, 0.0
    %v849 = vsel %vm631, %v769, 0.0
    %v850 = vsel %vm632, %v769, 0.0
    %v851 = vsel %vm633, %v769, 0.0
    %v852 = vsel %vm634, %v769, 0.0
    %v853 = vsel %vm635, %v769, 0.0
    %v854 = vsel %vm636, %v769, 0.0
    %v855 = vsel %vm637, %v769, 0.0
    %v856 = vsel %vm638, %v769, 0.0
    %v857 = vsel %vm639, %v769, 0.0
    %v858 = vsel %vm640, %v773, 0.0
    %v859 = vsel %vm641, %v773, 0.0
    %v860 = vsel %vm642, %v773, 0.0
    %v861 = vsel %vm643, %v773, 0.0
    %v862 = vsel %vm644, %v773, 0.0
    %v863 = vsel %vm645, %v773, 0.0
    %v864 = vsel %vm646, %v773, 0.0
    %v865 = vsel %vm647, %v773, 0.0
    %v866 = vsel %vm648, %v773, 0.0
    %v867 = vsel %vm649, %v773, 0.0
    %v868 = vsel %vm650, %v773, 0.0
    %v869 = vsel %vm651, %v773, 0.0
    %v870 = vsel %vm652, %v773, 0.0
    %v871 = vsel %vm653, %v773, 0.0
    %v872 = vsel %vm654, %v773, 0.0
    %v873 = vsel %vm655, %v773, 0.0
    %v874 = vsel %vm656, %v777, 0.0
    %v875 = vsel %vm657, %v777, 0.0
    %v876 = vsel %vm658, %v777, 0.0
    %v877 = vsel %vm659, %v777, 0.0
    %v878 = vsel %vm660, %v777, 0.0
    %v879 = vsel %vm661, %v777, 0.0
    %v880 = vsel %vm662, %v777, 0.0
    %v881 = vsel %vm663, %v777, 0.0
    %v882 = vsel %vm664, %v777, 0.0
    %v883 = vsel %vm665, %v777, 0.0
    %v884 = vsel %vm666, %v777, 0.0
    %v885 = vsel %vm667, %v777, 0.0
    %v886 = vsel %vm668, %v777, 0.0
    %v887 = vsel %vm669, %v777, 0.0
    %v888 = vsel %vm670, %v777, 0.0
    %v889 = vsel %vm671, %v777, 0.0
    %v890 = vsel %vm672, %v781, 0.0
    %v891 = vsel %vm673, %v781, 0.0
    %v892 = vsel %vm674, %v781, 0.0
    %v893 = vsel %vm675, %v781, 0.0
    %v894 = vsel %vm676, %v781, 0.0
    %v895 = vsel %vm677, %v781, 0.0
    %v896 = vsel %vm678, %v781, 0.0
    %v897 = vsel %vm679, %v781, 0.0
    %v898 = vsel %vm680, %v781, 0.0
    %v899 = vsel %vm681, %v781, 0.0
    %v900 = vsel %vm682, %v781, 0.0
    %v901 = vsel %vm683, %v781, 0.0
    %v902 = vsel %vm684, %v781, 0.0
    %v903 = vsel %vm685, %v781, 0.0
    %v904 = vsel %vm686, %v781, 0.0
    %v905 = vsel %vm687, %v781, 0.0
    %v906 = vsel %vm688, %v785, 0.0
    %v907 = vsel %vm689, %v785, 0.0
    %v908 = vsel %vm690, %v785, 0.0
    %v909 = vsel %vm691, %v785, 0.0
    %v910 = vsel %vm692, %v785, 0.0
    %v911 = vsel %vm693, %v785, 0.0
    %v912 = vsel %vm694, %v785, 0.0
    %v913 = vsel %vm695, %v785, 0.0
    %v914 = vsel %vm696, %v785, 0.0
    %v915 = vsel %vm697, %v785, 0.0
    %v916 = vsel %vm698, %v785, 0.0
    %v917 = vsel %vm699, %v785, 0.0
    %v918 = vsel %vm700, %v785, 0.0
    %v919 = vsel %vm701, %v785, 0.0
    %v920 = vsel %vm702, %v785, 0.0
    %v921 = vsel %vm703, %v785, 0.0
    %922 = vadd.xlane.f32.xlu0 %v794
    %v923 = vpop.xlane.xlu0 %922
    %924 = vadd.xlane.f32.xlu0 %v795
    %v925 = vpop.xlane.xlu0 %924
    %926 = vadd.xlane.f32.xlu0 %v796
    %v927 = vpop.xlane.xlu0 %926
    %928 = vadd.xlane.f32.xlu0 %v797
    %v929 = vpop.xlane.xlu0 %928
    %930 = vadd.xlane.f32.xlu0 %v798
    %v931 = vpop.xlane.xlu0 %930
    %932 = vadd.xlane.f32.xlu0 %v799
    %v933 = vpop.xlane.xlu0 %932
    %934 = vadd.xlane.f32.xlu0 %v800
    %v935 = vpop.xlane.xlu0 %934
    %936 = vadd.xlane.f32.xlu0 %v801
    %v937 = vpop.xlane.xlu0 %936
    %938 = vadd.xlane.f32.xlu0 %v802
    %v939 = vpop.xlane.xlu0 %938
    %940 = vadd.xlane.f32.xlu0 %v803
    %v941 = vpop.xlane.xlu0 %940
    %942 = vadd.xlane.f32.xlu0 %v804
    %v943 = vpop.xlane.xlu0 %942
    %944 = vadd.xlane.f32.xlu0 %v805
    %v945 = vpop.xlane.xlu0 %944
    %946 = vadd.xlane.f32.xlu0 %v806
    %v947 = vpop.xlane.xlu0 %946
    %948 = vadd.xlane.f32.xlu0 %v807
    %v949 = vpop.xlane.xlu0 %948
    %950 = vadd.xlane.f32.xlu0 %v808
    %v951 = vpop.xlane.xlu0 %950
    %952 = vadd.xlane.f32.xlu0 %v809
    %v953 = vpop.xlane.xlu0 %952
    %954 = vadd.xlane.f32.xlu0 %v810
    %v955 = vpop.xlane.xlu0 %954
    %956 = vadd.xlane.f32.xlu0 %v811
    %v957 = vpop.xlane.xlu0 %956
    %958 = vadd.xlane.f32.xlu0 %v812
    %v959 = vpop.xlane.xlu0 %958
    %960 = vadd.xlane.f32.xlu0 %v813
    %v961 = vpop.xlane.xlu0 %960
    %962 = vadd.xlane.f32.xlu0 %v814
    %v963 = vpop.xlane.xlu0 %962
    %964 = vadd.xlane.f32.xlu0 %v815
    %v965 = vpop.xlane.xlu0 %964
    %966 = vadd.xlane.f32.xlu0 %v816
    %v967 = vpop.xlane.xlu0 %966
    %968 = vadd.xlane.f32.xlu0 %v817
    %v969 = vpop.xlane.xlu0 %968
    %970 = vadd.xlane.f32.xlu0 %v818
    %v971 = vpop.xlane.xlu0 %970
    %972 = vadd.xlane.f32.xlu0 %v819
    %v973 = vpop.xlane.xlu0 %972
    %974 = vadd.xlane.f32.xlu0 %v820
    %v975 = vpop.xlane.xlu0 %974
    %976 = vadd.xlane.f32.xlu0 %v821
    %v977 = vpop.xlane.xlu0 %976
    %978 = vadd.xlane.f32.xlu0 %v822
    %v979 = vpop.xlane.xlu0 %978
    %980 = vadd.xlane.f32.xlu0 %v823
    %v981 = vpop.xlane.xlu0 %980
    %982 = vadd.xlane.f32.xlu0 %v824
    %v983 = vpop.xlane.xlu0 %982
    %984 = vadd.xlane.f32.xlu0 %v825
    %v985 = vpop.xlane.xlu0 %984
    %986 = vadd.xlane.f32.xlu0 %v826
    %v987 = vpop.xlane.xlu0 %986
    %988 = vadd.xlane.f32.xlu0 %v827
    %v989 = vpop.xlane.xlu0 %988
    %990 = vadd.xlane.f32.xlu0 %v828
    %v991 = vpop.xlane.xlu0 %990
    %992 = vadd.xlane.f32.xlu0 %v829
    %v993 = vpop.xlane.xlu0 %992
    %994 = vadd.xlane.f32.xlu0 %v830
    %v995 = vpop.xlane.xlu0 %994
    %996 = vadd.xlane.f32.xlu0 %v831
    %v997 = vpop.xlane.xlu0 %996
    %998 = vadd.xlane.f32.xlu0 %v832
    %v999 = vpop.xlane.xlu0 %998
    %1000 = vadd.xlane.f32.xlu0 %v833
    %v1001 = vpop.xlane.xlu0 %1000
    %1002 = vadd.xlane.f32.xlu0 %v834
    %v1003 = vpop.xlane.xlu0 %1002
    %1004 = vadd.xlane.f32.xlu0 %v835
    %v1005 = vpop.xlane.xlu0 %1004
    %1006 = vadd.xlane.f32.xlu0 %v836
    %v1007 = vpop.xlane.xlu0 %1006
    %1008 = vadd.xlane.f32.xlu0 %v837
    %v1009 = vpop.xlane.xlu0 %1008
    %1010 = vadd.xlane.f32.xlu0 %v838
    %v1011 = vpop.xlane.xlu0 %1010
    %1012 = vadd.xlane.f32.xlu0 %v839
    %v1013 = vpop.xlane.xlu0 %1012
    %1014 = vadd.xlane.f32.xlu0 %v840
    %v1015 = vpop.xlane.xlu0 %1014
    %1016 = vadd.xlane.f32.xlu0 %v841
    %v1017 = vpop.xlane.xlu0 %1016
    %1018 = vadd.xlane.f32.xlu0 %v842
    %v1019 = vpop.xlane.xlu0 %1018
    %1020 = vadd.xlane.f32.xlu0 %v843
    %v1021 = vpop.xlane.xlu0 %1020
    %1022 = vadd.xlane.f32.xlu0 %v844
    %v1023 = vpop.xlane.xlu0 %1022
    %1024 = vadd.xlane.f32.xlu0 %v845
    %v1025 = vpop.xlane.xlu0 %1024
    %1026 = vadd.xlane.f32.xlu0 %v846
    %v1027 = vpop.xlane.xlu0 %1026
    %1028 = vadd.xlane.f32.xlu0 %v847
    %v1029 = vpop.xlane.xlu0 %1028
    %1030 = vadd.xlane.f32.xlu0 %v848
    %v1031 = vpop.xlane.xlu0 %1030
    %1032 = vadd.xlane.f32.xlu0 %v849
    %v1033 = vpop.xlane.xlu0 %1032
    %1034 = vadd.xlane.f32.xlu0 %v850
    %v1035 = vpop.xlane.xlu0 %1034
    %1036 = vadd.xlane.f32.xlu0 %v851
    %v1037 = vpop.xlane.xlu0 %1036
    %1038 = vadd.xlane.f32.xlu0 %v852
    %v1039 = vpop.xlane.xlu0 %1038
    %1040 = vadd.xlane.f32.xlu0 %v853
    %v1041 = vpop.xlane.xlu0 %1040
    %1042 = vadd.xlane.f32.xlu0 %v854
    %v1043 = vpop.xlane.xlu0 %1042
    %1044 = vadd.xlane.f32.xlu0 %v855
    %v1045 = vpop.xlane.xlu0 %1044
    %1046 = vadd.xlane.f32.xlu0 %v856
    %v1047 = vpop.xlane.xlu0 %1046
    %1048 = vadd.xlane.f32.xlu0 %v857
    %v1049 = vpop.xlane.xlu0 %1048
    %1050 = vadd.xlane.f32.xlu0 %v858
    %v1051 = vpop.xlane.xlu0 %1050
    %1052 = vadd.xlane.f32.xlu0 %v859
    %v1053 = vpop.xlane.xlu0 %1052
    %1054 = vadd.xlane.f32.xlu0 %v860
    %v1055 = vpop.xlane.xlu0 %1054
    %1056 = vadd.xlane.f32.xlu0 %v861
    %v1057 = vpop.xlane.xlu0 %1056
    %1058 = vadd.xlane.f32.xlu0 %v862
    %v1059 = vpop.xlane.xlu0 %1058
    %1060 = vadd.xlane.f32.xlu0 %v863
    %v1061 = vpop.xlane.xlu0 %1060
    %1062 = vadd.xlane.f32.xlu0 %v864
    %v1063 = vpop.xlane.xlu0 %1062
    %1064 = vadd.xlane.f32.xlu0 %v865
    %v1065 = vpop.xlane.xlu0 %1064
    %1066 = vadd.xlane.f32.xlu0 %v866
    %v1067 = vpop.xlane.xlu0 %1066
    %1068 = vadd.xlane.f32.xlu0 %v867
    %v1069 = vpop.xlane.xlu0 %1068
    %1070 = vadd.xlane.f32.xlu0 %v868
    %v1071 = vpop.xlane.xlu0 %1070
    %1072 = vadd.xlane.f32.xlu0 %v869
    %v1073 = vpop.xlane.xlu0 %1072
    %1074 = vadd.xlane.f32.xlu0 %v870
    %v1075 = vpop.xlane.xlu0 %1074
    %1076 = vadd.xlane.f32.xlu0 %v871
    %v1077 = vpop.xlane.xlu0 %1076
    %1078 = vadd.xlane.f32.xlu0 %v872
    %v1079 = vpop.xlane.xlu0 %1078
    %1080 = vadd.xlane.f32.xlu0 %v873
    %v1081 = vpop.xlane.xlu0 %1080
    %1082 = vadd.xlane.f32.xlu0 %v874
    %v1083 = vpop.xlane.xlu0 %1082
    %1084 = vadd.xlane.f32.xlu0 %v875
    %v1085 = vpop.xlane.xlu0 %1084
    %1086 = vadd.xlane.f32.xlu0 %v876
    %v1087 = vpop.xlane.xlu0 %1086
    %1088 = vadd.xlane.f32.xlu0 %v877
    %v1089 = vpop.xlane.xlu0 %1088
    %1090 = vadd.xlane.f32.xlu0 %v878
    %v1091 = vpop.xlane.xlu0 %1090
    %1092 = vadd.xlane.f32.xlu0 %v879
    %v1093 = vpop.xlane.xlu0 %1092
    %1094 = vadd.xlane.f32.xlu0 %v880
    %v1095 = vpop.xlane.xlu0 %1094
    %1096 = vadd.xlane.f32.xlu0 %v881
    %v1097 = vpop.xlane.xlu0 %1096
    %1098 = vadd.xlane.f32.xlu0 %v882
    %v1099 = vpop.xlane.xlu0 %1098
    %1100 = vadd.xlane.f32.xlu0 %v883
    %v1101 = vpop.xlane.xlu0 %1100
    %1102 = vadd.xlane.f32.xlu0 %v884
    %v1103 = vpop.xlane.xlu0 %1102
    %1104 = vadd.xlane.f32.xlu0 %v885
    %v1105 = vpop.xlane.xlu0 %1104
    %1106 = vadd.xlane.f32.xlu0 %v886
    %v1107 = vpop.xlane.xlu0 %1106
    %1108 = vadd.xlane.f32.xlu0 %v887
    %v1109 = vpop.xlane.xlu0 %1108
    %1110 = vadd.xlane.f32.xlu0 %v888
    %v1111 = vpop.xlane.xlu0 %1110
    %1112 = vadd.xlane.f32.xlu0 %v889
    %v1113 = vpop.xlane.xlu0 %1112
    %1114 = vadd.xlane.f32.xlu0 %v890
    %v1115 = vpop.xlane.xlu0 %1114
    %1116 = vadd.xlane.f32.xlu0 %v891
    %v1117 = vpop.xlane.xlu0 %1116
    %1118 = vadd.xlane.f32.xlu0 %v892
    %v1119 = vpop.xlane.xlu0 %1118
    %1120 = vadd.xlane.f32.xlu0 %v893
    %v1121 = vpop.xlane.xlu0 %1120
    %1122 = vadd.xlane.f32.xlu0 %v894
    %v1123 = vpop.xlane.xlu0 %1122
    %1124 = vadd.xlane.f32.xlu0 %v895
    %v1125 = vpop.xlane.xlu0 %1124
    %1126 = vadd.xlane.f32.xlu0 %v896
    %v1127 = vpop.xlane.xlu0 %1126
    %1128 = vadd.xlane.f32.xlu0 %v897
    %v1129 = vpop.xlane.xlu0 %1128
    %1130 = vadd.xlane.f32.xlu0 %v898
    %v1131 = vpop.xlane.xlu0 %1130
    %1132 = vadd.xlane.f32.xlu0 %v899
    %v1133 = vpop.xlane.xlu0 %1132
    %1134 = vadd.xlane.f32.xlu0 %v900
    %v1135 = vpop.xlane.xlu0 %1134
    %1136 = vadd.xlane.f32.xlu0 %v901
    %v1137 = vpop.xlane.xlu0 %1136
    %1138 = vadd.xlane.f32.xlu0 %v902
    %v1139 = vpop.xlane.xlu0 %1138
    %1140 = vadd.xlane.f32.xlu0 %v903
    %v1141 = vpop.xlane.xlu0 %1140
    %1142 = vadd.xlane.f32.xlu0 %v904
    %v1143 = vpop.xlane.xlu0 %1142
    %1144 = vadd.xlane.f32.xlu0 %v905
    %v1145 = vpop.xlane.xlu0 %1144
    %1146 = vadd.xlane.f32.xlu0 %v906
    %v1147 = vpop.xlane.xlu0 %1146
    %1148 = vadd.xlane.f32.xlu0 %v907
    %v1149 = vpop.xlane.xlu0 %1148
    %1150 = vadd.xlane.f32.xlu0 %v908
    %v1151 = vpop.xlane.xlu0 %1150
    %1152 = vadd.xlane.f32.xlu0 %v909
    %v1153 = vpop.xlane.xlu0 %1152
    %1154 = vadd.xlane.f32.xlu0 %v910
    %v1155 = vpop.xlane.xlu0 %1154
    %1156 = vadd.xlane.f32.xlu0 %v911
    %v1157 = vpop.xlane.xlu0 %1156
    %1158 = vadd.xlane.f32.xlu0 %v912
    %v1159 = vpop.xlane.xlu0 %1158
    %1160 = vadd.xlane.f32.xlu0 %v913
    %v1161 = vpop.xlane.xlu0 %1160
    %1162 = vadd.xlane.f32.xlu0 %v914
    %v1163 = vpop.xlane.xlu0 %1162
    %1164 = vadd.xlane.f32.xlu0 %v915
    %v1165 = vpop.xlane.xlu0 %1164
    %1166 = vadd.xlane.f32.xlu0 %v916
    %v1167 = vpop.xlane.xlu0 %1166
    %1168 = vadd.xlane.f32.xlu0 %v917
    %v1169 = vpop.xlane.xlu0 %1168
    %1170 = vadd.xlane.f32.xlu0 %v918
    %v1171 = vpop.xlane.xlu0 %1170
    %1172 = vadd.xlane.f32.xlu0 %v919
    %v1173 = vpop.xlane.xlu0 %1172
    %1174 = vadd.xlane.f32.xlu0 %v920
    %v1175 = vpop.xlane.xlu0 %1174
    %1176 = vadd.xlane.f32.xlu0 %v921
    %v1177 = vpop.xlane.xlu0 %1176
    %v1306 = vlaneseq
    %v1307 = vshrl.u32 %v1306, 7
    %v1308 = vsub.s32 %v38, %v1307
    %v1309 = vrot.slane %v923, %v1308
    %v1310 = vadd.s32 %v38, 4294967288
    %v1311 = vlaneseq
    %v1312 = vshrl.u32 %v1311, 7
    %v1313 = vsub.s32 %v1310, %v1312
    %v1314 = vrot.slane %v925, %v1313
    %vm1315 = vcmask 130112
    %v1316 = vsel %vm1315, %v1314, %v1309
    %v1317 = vadd.s32 %v38, 4294967280
    %v1318 = vlaneseq
    %v1319 = vshrl.u32 %v1318, 7
    %v1320 = vsub.s32 %v1317, %v1319
    %v1321 = vrot.slane %v927, %v1320
    %vm1322 = vcmask 195712
    %v1323 = vsel %vm1322, %v1321, %v1316
    %v1324 = vadd.s32 %v38, 4294967272
    %v1325 = vlaneseq
    %v1326 = vshrl.u32 %v1325, 7
    %v1327 = vsub.s32 %v1324, %v1326
    %v1328 = vrot.slane %v929, %v1327
    %vm1329 = vcmask 261312
    %v1330 = vsel %vm1329, %v1328, %v1323
    %v1331 = vadd.s32 %v38, 4294967264
    %v1332 = vlaneseq
    %v1333 = vshrl.u32 %v1332, 7
    %v1334 = vsub.s32 %v1331, %v1333
    %v1335 = vrot.slane %v931, %v1334
    %vm1336 = vcmask 326912
    %v1337 = vsel %vm1336, %v1335, %v1330
    %v1338 = vadd.s32 %v38, 4294967256
    %v1339 = vlaneseq
    %v1340 = vshrl.u32 %v1339, 7
    %v1341 = vsub.s32 %v1338, %v1340
    %v1342 = vrot.slane %v933, %v1341
    %vm1343 = vcmask 392512
    %v1344 = vsel %vm1343, %v1342, %v1337
    %v1345 = vadd.s32 %v38, 4294967248
    %v1346 = vlaneseq
    %v1347 = vshrl.u32 %v1346, 7
    %v1348 = vsub.s32 %v1345, %v1347
    %v1349 = vrot.slane %v935, %v1348
    %vm1350 = vcmask 458112
    %v1351 = vsel %vm1350, %v1349, %v1344
    %v1352 = vadd.s32 %v38, 4294967240
    %v1353 = vlaneseq
    %v1354 = vshrl.u32 %v1353, 7
    %v1355 = vsub.s32 %v1352, %v1354
    %v1356 = vrot.slane %v937, %v1355
    %vm1357 = vcmask 523712
    %v1358 = vsel %vm1357, %v1356, %v1351
    %v1359 = vadd.s32 %v38, 4294967232
    %v1360 = vlaneseq
    %v1361 = vshrl.u32 %v1360, 7
    %v1362 = vsub.s32 %v1359, %v1361
    %v1363 = vrot.slane %v939, %v1362
    %vm1364 = vcmask 589312
    %v1365 = vsel %vm1364, %v1363, %v1358
    %v1366 = vadd.s32 %v38, 4294967224
    %v1367 = vlaneseq
    %v1368 = vshrl.u32 %v1367, 7
    %v1369 = vsub.s32 %v1366, %v1368
    %v1370 = vrot.slane %v941, %v1369
    %vm1371 = vcmask 654912
    %v1372 = vsel %vm1371, %v1370, %v1365
    %v1373 = vadd.s32 %v38, 4294967216
    %v1374 = vlaneseq
    %v1375 = vshrl.u32 %v1374, 7
    %v1376 = vsub.s32 %v1373, %v1375
    %v1377 = vrot.slane %v943, %v1376
    %vm1378 = vcmask 720512
    %v1379 = vsel %vm1378, %v1377, %v1372
    %v1380 = vadd.s32 %v38, 4294967208
    %v1381 = vlaneseq
    %v1382 = vshrl.u32 %v1381, 7
    %v1383 = vsub.s32 %v1380, %v1382
    %v1384 = vrot.slane %v945, %v1383
    %vm1385 = vcmask 786112
    %v1386 = vsel %vm1385, %v1384, %v1379
    %v1387 = vadd.s32 %v38, 4294967200
    %v1388 = vlaneseq
    %v1389 = vshrl.u32 %v1388, 7
    %v1390 = vsub.s32 %v1387, %v1389
    %v1391 = vrot.slane %v947, %v1390
    %vm1392 = vcmask 851712
    %v1393 = vsel %vm1392, %v1391, %v1386
    %v1394 = vadd.s32 %v38, 4294967192
    %v1395 = vlaneseq
    %v1396 = vshrl.u32 %v1395, 7
    %v1397 = vsub.s32 %v1394, %v1396
    %v1398 = vrot.slane %v949, %v1397
    %vm1399 = vcmask 917312
    %v1400 = vsel %vm1399, %v1398, %v1393
    %v1401 = vadd.s32 %v38, 4294967184
    %v1402 = vlaneseq
    %v1403 = vshrl.u32 %v1402, 7
    %v1404 = vsub.s32 %v1401, %v1403
    %v1405 = vrot.slane %v951, %v1404
    %vm1406 = vcmask 982912
    %v1407 = vsel %vm1406, %v1405, %v1400
    %v1408 = vadd.s32 %v38, 4294967176
    %v1409 = vlaneseq
    %v1410 = vshrl.u32 %v1409, 7
    %v1411 = vsub.s32 %v1408, %v1410
    %v1412 = vrot.slane %v953, %v1411
    %vm1413 = vcmask 1048512
    %v1414 = vsel %vm1413, %v1412, %v1407
    %v1415 = vlaneseq
    %v1416 = vshrl.u32 %v1415, 7
    %v1417 = vsub.s32 %v38, %v1416
    %v1418 = vrot.slane %v955, %v1417
    %v1419 = vlaneseq
    %v1420 = vshrl.u32 %v1419, 7
    %v1421 = vsub.s32 %v1310, %v1420
    %v1422 = vrot.slane %v957, %v1421
    %v1423 = vsel %vm1315, %v1422, %v1418
    %v1424 = vlaneseq
    %v1425 = vshrl.u32 %v1424, 7
    %v1426 = vsub.s32 %v1317, %v1425
    %v1427 = vrot.slane %v959, %v1426
    %v1428 = vsel %vm1322, %v1427, %v1423
    %v1429 = vlaneseq
    %v1430 = vshrl.u32 %v1429, 7
    %v1431 = vsub.s32 %v1324, %v1430
    %v1432 = vrot.slane %v961, %v1431
    %v1433 = vsel %vm1329, %v1432, %v1428
    %v1434 = vlaneseq
    %v1435 = vshrl.u32 %v1434, 7
    %v1436 = vsub.s32 %v1331, %v1435
    %v1437 = vrot.slane %v963, %v1436
    %v1438 = vsel %vm1336, %v1437, %v1433
    %v1439 = vlaneseq
    %v1440 = vshrl.u32 %v1439, 7
    %v1441 = vsub.s32 %v1338, %v1440
    %v1442 = vrot.slane %v965, %v1441
    %v1443 = vsel %vm1343, %v1442, %v1438
    %v1444 = vlaneseq
    %v1445 = vshrl.u32 %v1444, 7
    %v1446 = vsub.s32 %v1345, %v1445
    %v1447 = vrot.slane %v967, %v1446
    %v1448 = vsel %vm1350, %v1447, %v1443
    %v1449 = vlaneseq
    %v1450 = vshrl.u32 %v1449, 7
    %v1451 = vsub.s32 %v1352, %v1450
    %v1452 = vrot.slane %v969, %v1451
    %v1453 = vsel %vm1357, %v1452, %v1448
    %v1454 = vlaneseq
    %v1455 = vshrl.u32 %v1454, 7
    %v1456 = vsub.s32 %v1359, %v1455
    %v1457 = vrot.slane %v971, %v1456
    %v1458 = vsel %vm1364, %v1457, %v1453
    %v1459 = vlaneseq
    %v1460 = vshrl.u32 %v1459, 7
    %v1461 = vsub.s32 %v1366, %v1460
    %v1462 = vrot.slane %v973, %v1461
    %v1463 = vsel %vm1371, %v1462, %v1458
    %v1464 = vlaneseq
    %v1465 = vshrl.u32 %v1464, 7
    %v1466 = vsub.s32 %v1373, %v1465
    %v1467 = vrot.slane %v975, %v1466
    %v1468 = vsel %vm1378, %v1467, %v1463
    %v1469 = vlaneseq
    %v1470 = vshrl.u32 %v1469, 7
    %v1471 = vsub.s32 %v1380, %v1470
    %v1472 = vrot.slane %v977, %v1471
    %v1473 = vsel %vm1385, %v1472, %v1468
    %v1474 = vlaneseq
    %v1475 = vshrl.u32 %v1474, 7
    %v1476 = vsub.s32 %v1387, %v1475
    %v1477 = vrot.slane %v979, %v1476
    %v1478 = vsel %vm1392, %v1477, %v1473
    %v1479 = vlaneseq
    %v1480 = vshrl.u32 %v1479, 7
    %v1481 = vsub.s32 %v1394, %v1480
    %v1482 = vrot.slane %v981, %v1481
    %v1483 = vsel %vm1399, %v1482, %v1478
    %v1484 = vlaneseq
    %v1485 = vshrl.u32 %v1484, 7
    %v1486 = vsub.s32 %v1401, %v1485
    %v1487 = vrot.slane %v983, %v1486
    %v1488 = vsel %vm1406, %v1487, %v1483
    %v1489 = vlaneseq
    %v1490 = vshrl.u32 %v1489, 7
    %v1491 = vsub.s32 %v1408, %v1490
    %v1492 = vrot.slane %v985, %v1491
    %v1493 = vsel %vm1413, %v1492, %v1488
    %v1494 = vlaneseq
    %v1495 = vshrl.u32 %v1494, 7
    %v1496 = vsub.s32 %v38, %v1495
    %v1497 = vrot.slane %v987, %v1496
    %v1498 = vlaneseq
    %v1499 = vshrl.u32 %v1498, 7
    %v1500 = vsub.s32 %v1310, %v1499
    %v1501 = vrot.slane %v989, %v1500
    %v1502 = vsel %vm1315, %v1501, %v1497
    %v1503 = vlaneseq
    %v1504 = vshrl.u32 %v1503, 7
    %v1505 = vsub.s32 %v1317, %v1504
    %v1506 = vrot.slane %v991, %v1505
    %v1507 = vsel %vm1322, %v1506, %v1502
    %v1508 = vlaneseq
    %v1509 = vshrl.u32 %v1508, 7
    %v1510 = vsub.s32 %v1324, %v1509
    %v1511 = vrot.slane %v993, %v1510
    %v1512 = vsel %vm1329, %v1511, %v1507
    %v1513 = vlaneseq
    %v1514 = vshrl.u32 %v1513, 7
    %v1515 = vsub.s32 %v1331, %v1514
    %v1516 = vrot.slane %v995, %v1515
    %v1517 = vsel %vm1336, %v1516, %v1512
    %v1518 = vlaneseq
    %v1519 = vshrl.u32 %v1518, 7
    %v1520 = vsub.s32 %v1338, %v1519
    %v1521 = vrot.slane %v997, %v1520
    %v1522 = vsel %vm1343, %v1521, %v1517
    %v1523 = vlaneseq
    %v1524 = vshrl.u32 %v1523, 7
    %v1525 = vsub.s32 %v1345, %v1524
    %v1526 = vrot.slane %v999, %v1525
    %v1527 = vsel %vm1350, %v1526, %v1522
    %v1528 = vlaneseq
    %v1529 = vshrl.u32 %v1528, 7
    %v1530 = vsub.s32 %v1352, %v1529
    %v1531 = vrot.slane %v1001, %v1530
    %v1532 = vsel %vm1357, %v1531, %v1527
    %v1533 = vlaneseq
    %v1534 = vshrl.u32 %v1533, 7
    %v1535 = vsub.s32 %v1359, %v1534
    %v1536 = vrot.slane %v1003, %v1535
    %v1537 = vsel %vm1364, %v1536, %v1532
    %v1538 = vlaneseq
    %v1539 = vshrl.u32 %v1538, 7
    %v1540 = vsub.s32 %v1366, %v1539
    %v1541 = vrot.slane %v1005, %v1540
    %v1542 = vsel %vm1371, %v1541, %v1537
    %v1543 = vlaneseq
    %v1544 = vshrl.u32 %v1543, 7
    %v1545 = vsub.s32 %v1373, %v1544
    %v1546 = vrot.slane %v1007, %v1545
    %v1547 = vsel %vm1378, %v1546, %v1542
    %v1548 = vlaneseq
    %v1549 = vshrl.u32 %v1548, 7
    %v1550 = vsub.s32 %v1380, %v1549
    %v1551 = vrot.slane %v1009, %v1550
    %v1552 = vsel %vm1385, %v1551, %v1547
    %v1553 = vlaneseq
    %v1554 = vshrl.u32 %v1553, 7
    %v1555 = vsub.s32 %v1387, %v1554
    %v1556 = vrot.slane %v1011, %v1555
    %v1557 = vsel %vm1392, %v1556, %v1552
    %v1558 = vlaneseq
    %v1559 = vshrl.u32 %v1558, 7
    %v1560 = vsub.s32 %v1394, %v1559
    %v1561 = vrot.slane %v1013, %v1560
    %v1562 = vsel %vm1399, %v1561, %v1557
    %v1563 = vlaneseq
    %v1564 = vshrl.u32 %v1563, 7
    %v1565 = vsub.s32 %v1401, %v1564
    %v1566 = vrot.slane %v1015, %v1565
    %v1567 = vsel %vm1406, %v1566, %v1562
    %v1568 = vlaneseq
    %v1569 = vshrl.u32 %v1568, 7
    %v1570 = vsub.s32 %v1408, %v1569
    %v1571 = vrot.slane %v1017, %v1570
    %v1572 = vsel %vm1413, %v1571, %v1567
    %v1573 = vlaneseq
    %v1574 = vshrl.u32 %v1573, 7
    %v1575 = vsub.s32 %v38, %v1574
    %v1576 = vrot.slane %v1019, %v1575
    %v1577 = vlaneseq
    %v1578 = vshrl.u32 %v1577, 7
    %v1579 = vsub.s32 %v1310, %v1578
    %v1580 = vrot.slane %v1021, %v1579
    %v1581 = vsel %vm1315, %v1580, %v1576
    %v1582 = vlaneseq
    %v1583 = vshrl.u32 %v1582, 7
    %v1584 = vsub.s32 %v1317, %v1583
    %v1585 = vrot.slane %v1023, %v1584
    %v1586 = vsel %vm1322, %v1585, %v1581
    %v1587 = vlaneseq
    %v1588 = vshrl.u32 %v1587, 7
    %v1589 = vsub.s32 %v1324, %v1588
    %v1590 = vrot.slane %v1025, %v1589
    %v1591 = vsel %vm1329, %v1590, %v1586
    %v1592 = vlaneseq
    %v1593 = vshrl.u32 %v1592, 7
    %v1594 = vsub.s32 %v1331, %v1593
    %v1595 = vrot.slane %v1027, %v1594
    %v1596 = vsel %vm1336, %v1595, %v1591
    %v1597 = vlaneseq
    %v1598 = vshrl.u32 %v1597, 7
    %v1599 = vsub.s32 %v1338, %v1598
    %v1600 = vrot.slane %v1029, %v1599
    %v1601 = vsel %vm1343, %v1600, %v1596
    %v1602 = vlaneseq
    %v1603 = vshrl.u32 %v1602, 7
    %v1604 = vsub.s32 %v1345, %v1603
    %v1605 = vrot.slane %v1031, %v1604
    %v1606 = vsel %vm1350, %v1605, %v1601
    %v1607 = vlaneseq
    %v1608 = vshrl.u32 %v1607, 7
    %v1609 = vsub.s32 %v1352, %v1608
    %v1610 = vrot.slane %v1033, %v1609
    %v1611 = vsel %vm1357, %v1610, %v1606
    %v1612 = vlaneseq
    %v1613 = vshrl.u32 %v1612, 7
    %v1614 = vsub.s32 %v1359, %v1613
    %v1615 = vrot.slane %v1035, %v1614
    %v1616 = vsel %vm1364, %v1615, %v1611
    %v1617 = vlaneseq
    %v1618 = vshrl.u32 %v1617, 7
    %v1619 = vsub.s32 %v1366, %v1618
    %v1620 = vrot.slane %v1037, %v1619
    %v1621 = vsel %vm1371, %v1620, %v1616
    %v1622 = vlaneseq
    %v1623 = vshrl.u32 %v1622, 7
    %v1624 = vsub.s32 %v1373, %v1623
    %v1625 = vrot.slane %v1039, %v1624
    %v1626 = vsel %vm1378, %v1625, %v1621
    %v1627 = vlaneseq
    %v1628 = vshrl.u32 %v1627, 7
    %v1629 = vsub.s32 %v1380, %v1628
    %v1630 = vrot.slane %v1041, %v1629
    %v1631 = vsel %vm1385, %v1630, %v1626
    %v1632 = vlaneseq
    %v1633 = vshrl.u32 %v1632, 7
    %v1634 = vsub.s32 %v1387, %v1633
    %v1635 = vrot.slane %v1043, %v1634
    %v1636 = vsel %vm1392, %v1635, %v1631
    %v1637 = vlaneseq
    %v1638 = vshrl.u32 %v1637, 7
    %v1639 = vsub.s32 %v1394, %v1638
    %v1640 = vrot.slane %v1045, %v1639
    %v1641 = vsel %vm1399, %v1640, %v1636
    %v1642 = vlaneseq
    %v1643 = vshrl.u32 %v1642, 7
    %v1644 = vsub.s32 %v1401, %v1643
    %v1645 = vrot.slane %v1047, %v1644
    %v1646 = vsel %vm1406, %v1645, %v1641
    %v1647 = vlaneseq
    %v1648 = vshrl.u32 %v1647, 7
    %v1649 = vsub.s32 %v1408, %v1648
    %v1650 = vrot.slane %v1049, %v1649
    %v1651 = vsel %vm1413, %v1650, %v1646
    %v1652 = vlaneseq
    %v1653 = vshrl.u32 %v1652, 7
    %v1654 = vsub.s32 %v38, %v1653
    %v1655 = vrot.slane %v1051, %v1654
    %v1656 = vlaneseq
    %v1657 = vshrl.u32 %v1656, 7
    %v1658 = vsub.s32 %v1310, %v1657
    %v1659 = vrot.slane %v1053, %v1658
    %v1660 = vsel %vm1315, %v1659, %v1655
    %v1661 = vlaneseq
    %v1662 = vshrl.u32 %v1661, 7
    %v1663 = vsub.s32 %v1317, %v1662
    %v1664 = vrot.slane %v1055, %v1663
    %v1665 = vsel %vm1322, %v1664, %v1660
    %v1666 = vlaneseq
    %v1667 = vshrl.u32 %v1666, 7
    %v1668 = vsub.s32 %v1324, %v1667
    %v1669 = vrot.slane %v1057, %v1668
    %v1670 = vsel %vm1329, %v1669, %v1665
    %v1671 = vlaneseq
    %v1672 = vshrl.u32 %v1671, 7
    %v1673 = vsub.s32 %v1331, %v1672
    %v1674 = vrot.slane %v1059, %v1673
    %v1675 = vsel %vm1336, %v1674, %v1670
    %v1676 = vlaneseq
    %v1677 = vshrl.u32 %v1676, 7
    %v1678 = vsub.s32 %v1338, %v1677
    %v1679 = vrot.slane %v1061, %v1678
    %v1680 = vsel %vm1343, %v1679, %v1675
    %v1681 = vlaneseq
    %v1682 = vshrl.u32 %v1681, 7
    %v1683 = vsub.s32 %v1345, %v1682
    %v1684 = vrot.slane %v1063, %v1683
    %v1685 = vsel %vm1350, %v1684, %v1680
    %v1686 = vlaneseq
    %v1687 = vshrl.u32 %v1686, 7
    %v1688 = vsub.s32 %v1352, %v1687
    %v1689 = vrot.slane %v1065, %v1688
    %v1690 = vsel %vm1357, %v1689, %v1685
    %v1691 = vlaneseq
    %v1692 = vshrl.u32 %v1691, 7
    %v1693 = vsub.s32 %v1359, %v1692
    %v1694 = vrot.slane %v1067, %v1693
    %v1695 = vsel %vm1364, %v1694, %v1690
    %v1696 = vlaneseq
    %v1697 = vshrl.u32 %v1696, 7
    %v1698 = vsub.s32 %v1366, %v1697
    %v1699 = vrot.slane %v1069, %v1698
    %v1700 = vsel %vm1371, %v1699, %v1695
    %v1701 = vlaneseq
    %v1702 = vshrl.u32 %v1701, 7
    %v1703 = vsub.s32 %v1373, %v1702
    %v1704 = vrot.slane %v1071, %v1703
    %v1705 = vsel %vm1378, %v1704, %v1700
    %v1706 = vlaneseq
    %v1707 = vshrl.u32 %v1706, 7
    %v1708 = vsub.s32 %v1380, %v1707
    %v1709 = vrot.slane %v1073, %v1708
    %v1710 = vsel %vm1385, %v1709, %v1705
    %v1711 = vlaneseq
    %v1712 = vshrl.u32 %v1711, 7
    %v1713 = vsub.s32 %v1387, %v1712
    %v1714 = vrot.slane %v1075, %v1713
    %v1715 = vsel %vm1392, %v1714, %v1710
    %v1716 = vlaneseq
    %v1717 = vshrl.u32 %v1716, 7
    %v1718 = vsub.s32 %v1394, %v1717
    %v1719 = vrot.slane %v1077, %v1718
    %v1720 = vsel %vm1399, %v1719, %v1715
    %v1721 = vlaneseq
    %v1722 = vshrl.u32 %v1721, 7
    %v1723 = vsub.s32 %v1401, %v1722
    %v1724 = vrot.slane %v1079, %v1723
    %v1725 = vsel %vm1406, %v1724, %v1720
    %v1726 = vlaneseq
    %v1727 = vshrl.u32 %v1726, 7
    %v1728 = vsub.s32 %v1408, %v1727
    %v1729 = vrot.slane %v1081, %v1728
    %v1730 = vsel %vm1413, %v1729, %v1725
    %v1731 = vlaneseq
    %v1732 = vshrl.u32 %v1731, 7
    %v1733 = vsub.s32 %v38, %v1732
    %v1734 = vrot.slane %v1083, %v1733
    %v1735 = vlaneseq
    %v1736 = vshrl.u32 %v1735, 7
    %v1737 = vsub.s32 %v1310, %v1736
    %v1738 = vrot.slane %v1085, %v1737
    %v1739 = vsel %vm1315, %v1738, %v1734
    %v1740 = vlaneseq
    %v1741 = vshrl.u32 %v1740, 7
    %v1742 = vsub.s32 %v1317, %v1741
    %v1743 = vrot.slane %v1087, %v1742
    %v1744 = vsel %vm1322, %v1743, %v1739
    %v1745 = vlaneseq
    %v1746 = vshrl.u32 %v1745, 7
    %v1747 = vsub.s32 %v1324, %v1746
    %v1748 = vrot.slane %v1089, %v1747
    %v1749 = vsel %vm1329, %v1748, %v1744
    %v1750 = vlaneseq
    %v1751 = vshrl.u32 %v1750, 7
    %v1752 = vsub.s32 %v1331, %v1751
    %v1753 = vrot.slane %v1091, %v1752
    %v1754 = vsel %vm1336, %v1753, %v1749
    %v1755 = vlaneseq
    %v1756 = vshrl.u32 %v1755, 7
    %v1757 = vsub.s32 %v1338, %v1756
    %v1758 = vrot.slane %v1093, %v1757
    %v1759 = vsel %vm1343, %v1758, %v1754
    %v1760 = vlaneseq
    %v1761 = vshrl.u32 %v1760, 7
    %v1762 = vsub.s32 %v1345, %v1761
    %v1763 = vrot.slane %v1095, %v1762
    %v1764 = vsel %vm1350, %v1763, %v1759
    %v1765 = vlaneseq
    %v1766 = vshrl.u32 %v1765, 7
    %v1767 = vsub.s32 %v1352, %v1766
    %v1768 = vrot.slane %v1097, %v1767
    %v1769 = vsel %vm1357, %v1768, %v1764
    %v1770 = vlaneseq
    %v1771 = vshrl.u32 %v1770, 7
    %v1772 = vsub.s32 %v1359, %v1771
    %v1773 = vrot.slane %v1099, %v1772
    %v1774 = vsel %vm1364, %v1773, %v1769
    %v1775 = vlaneseq
    %v1776 = vshrl.u32 %v1775, 7
    %v1777 = vsub.s32 %v1366, %v1776
    %v1778 = vrot.slane %v1101, %v1777
    %v1779 = vsel %vm1371, %v1778, %v1774
    %v1780 = vlaneseq
    %v1781 = vshrl.u32 %v1780, 7
    %v1782 = vsub.s32 %v1373, %v1781
    %v1783 = vrot.slane %v1103, %v1782
    %v1784 = vsel %vm1378, %v1783, %v1779
    %v1785 = vlaneseq
    %v1786 = vshrl.u32 %v1785, 7
    %v1787 = vsub.s32 %v1380, %v1786
    %v1788 = vrot.slane %v1105, %v1787
    %v1789 = vsel %vm1385, %v1788, %v1784
    %v1790 = vlaneseq
    %v1791 = vshrl.u32 %v1790, 7
    %v1792 = vsub.s32 %v1387, %v1791
    %v1793 = vrot.slane %v1107, %v1792
    %v1794 = vsel %vm1392, %v1793, %v1789
    %v1795 = vlaneseq
    %v1796 = vshrl.u32 %v1795, 7
    %v1797 = vsub.s32 %v1394, %v1796
    %v1798 = vrot.slane %v1109, %v1797
    %v1799 = vsel %vm1399, %v1798, %v1794
    %v1800 = vlaneseq
    %v1801 = vshrl.u32 %v1800, 7
    %v1802 = vsub.s32 %v1401, %v1801
    %v1803 = vrot.slane %v1111, %v1802
    %v1804 = vsel %vm1406, %v1803, %v1799
    %v1805 = vlaneseq
    %v1806 = vshrl.u32 %v1805, 7
    %v1807 = vsub.s32 %v1408, %v1806
    %v1808 = vrot.slane %v1113, %v1807
    %v1809 = vsel %vm1413, %v1808, %v1804
    %v1810 = vlaneseq
    %v1811 = vshrl.u32 %v1810, 7
    %v1812 = vsub.s32 %v38, %v1811
    %v1813 = vrot.slane %v1115, %v1812
    %v1814 = vlaneseq
    %v1815 = vshrl.u32 %v1814, 7
    %v1816 = vsub.s32 %v1310, %v1815
    %v1817 = vrot.slane %v1117, %v1816
    %v1818 = vsel %vm1315, %v1817, %v1813
    %v1819 = vlaneseq
    %v1820 = vshrl.u32 %v1819, 7
    %v1821 = vsub.s32 %v1317, %v1820
    %v1822 = vrot.slane %v1119, %v1821
    %v1823 = vsel %vm1322, %v1822, %v1818
    %v1824 = vlaneseq
    %v1825 = vshrl.u32 %v1824, 7
    %v1826 = vsub.s32 %v1324, %v1825
    %v1827 = vrot.slane %v1121, %v1826
    %v1828 = vsel %vm1329, %v1827, %v1823
    %v1829 = vlaneseq
    %v1830 = vshrl.u32 %v1829, 7
    %v1831 = vsub.s32 %v1331, %v1830
    %v1832 = vrot.slane %v1123, %v1831
    %v1833 = vsel %vm1336, %v1832, %v1828
    %v1834 = vlaneseq
    %v1835 = vshrl.u32 %v1834, 7
    %v1836 = vsub.s32 %v1338, %v1835
    %v1837 = vrot.slane %v1125, %v1836
    %v1838 = vsel %vm1343, %v1837, %v1833
    %v1839 = vlaneseq
    %v1840 = vshrl.u32 %v1839, 7
    %v1841 = vsub.s32 %v1345, %v1840
    %v1842 = vrot.slane %v1127, %v1841
    %v1843 = vsel %vm1350, %v1842, %v1838
    %v1844 = vlaneseq
    %v1845 = vshrl.u32 %v1844, 7
    %v1846 = vsub.s32 %v1352, %v1845
    %v1847 = vrot.slane %v1129, %v1846
    %v1848 = vsel %vm1357, %v1847, %v1843
    %v1849 = vlaneseq
    %v1850 = vshrl.u32 %v1849, 7
    %v1851 = vsub.s32 %v1359, %v1850
    %v1852 = vrot.slane %v1131, %v1851
    %v1853 = vsel %vm1364, %v1852, %v1848
    %v1854 = vlaneseq
    %v1855 = vshrl.u32 %v1854, 7
    %v1856 = vsub.s32 %v1366, %v1855
    %v1857 = vrot.slane %v1133, %v1856
    %v1858 = vsel %vm1371, %v1857, %v1853
    %v1859 = vlaneseq
    %v1860 = vshrl.u32 %v1859, 7
    %v1861 = vsub.s32 %v1373, %v1860
    %v1862 = vrot.slane %v1135, %v1861
    %v1863 = vsel %vm1378, %v1862, %v1858
    %v1864 = vlaneseq
    %v1865 = vshrl.u32 %v1864, 7
    %v1866 = vsub.s32 %v1380, %v1865
    %v1867 = vrot.slane %v1137, %v1866
    %v1868 = vsel %vm1385, %v1867, %v1863
    %v1869 = vlaneseq
    %v1870 = vshrl.u32 %v1869, 7
    %v1871 = vsub.s32 %v1387, %v1870
    %v1872 = vrot.slane %v1139, %v1871
    %v1873 = vsel %vm1392, %v1872, %v1868
    %v1874 = vlaneseq
    %v1875 = vshrl.u32 %v1874, 7
    %v1876 = vsub.s32 %v1394, %v1875
    %v1877 = vrot.slane %v1141, %v1876
    %v1878 = vsel %vm1399, %v1877, %v1873
    %v1879 = vlaneseq
    %v1880 = vshrl.u32 %v1879, 7
    %v1881 = vsub.s32 %v1401, %v1880
    %v1882 = vrot.slane %v1143, %v1881
    %v1883 = vsel %vm1406, %v1882, %v1878
    %v1884 = vlaneseq
    %v1885 = vshrl.u32 %v1884, 7
    %v1886 = vsub.s32 %v1408, %v1885
    %v1887 = vrot.slane %v1145, %v1886
    %v1888 = vsel %vm1413, %v1887, %v1883
    %v1889 = vlaneseq
    %v1890 = vshrl.u32 %v1889, 7
    %v1891 = vsub.s32 %v38, %v1890
    %v1892 = vrot.slane %v1147, %v1891
    %v1893 = vlaneseq
    %v1894 = vshrl.u32 %v1893, 7
    %v1895 = vsub.s32 %v1310, %v1894
    %v1896 = vrot.slane %v1149, %v1895
    %v1897 = vsel %vm1315, %v1896, %v1892
    %v1898 = vlaneseq
    %v1899 = vshrl.u32 %v1898, 7
    %v1900 = vsub.s32 %v1317, %v1899
    %v1901 = vrot.slane %v1151, %v1900
    %v1902 = vsel %vm1322, %v1901, %v1897
    %v1903 = vlaneseq
    %v1904 = vshrl.u32 %v1903, 7
    %v1905 = vsub.s32 %v1324, %v1904
    %v1906 = vrot.slane %v1153, %v1905
    %v1907 = vsel %vm1329, %v1906, %v1902
    %v1908 = vlaneseq
    %v1909 = vshrl.u32 %v1908, 7
    %v1910 = vsub.s32 %v1331, %v1909
    %v1911 = vrot.slane %v1155, %v1910
    %v1912 = vsel %vm1336, %v1911, %v1907
    %v1913 = vlaneseq
    %v1914 = vshrl.u32 %v1913, 7
    %v1915 = vsub.s32 %v1338, %v1914
    %v1916 = vrot.slane %v1157, %v1915
    %v1917 = vsel %vm1343, %v1916, %v1912
    %v1918 = vlaneseq
    %v1919 = vshrl.u32 %v1918, 7
    %v1920 = vsub.s32 %v1345, %v1919
    %v1921 = vrot.slane %v1159, %v1920
    %v1922 = vsel %vm1350, %v1921, %v1917
    %v1923 = vlaneseq
    %v1924 = vshrl.u32 %v1923, 7
    %v1925 = vsub.s32 %v1352, %v1924
    %v1926 = vrot.slane %v1161, %v1925
    %v1927 = vsel %vm1357, %v1926, %v1922
    %v1928 = vlaneseq
    %v1929 = vshrl.u32 %v1928, 7
    %v1930 = vsub.s32 %v1359, %v1929
    %v1931 = vrot.slane %v1163, %v1930
    %v1932 = vsel %vm1364, %v1931, %v1927
    %v1933 = vlaneseq
    %v1934 = vshrl.u32 %v1933, 7
    %v1935 = vsub.s32 %v1366, %v1934
    %v1936 = vrot.slane %v1165, %v1935
    %v1937 = vsel %vm1371, %v1936, %v1932
    %v1938 = vlaneseq
    %v1939 = vshrl.u32 %v1938, 7
    %v1940 = vsub.s32 %v1373, %v1939
    %v1941 = vrot.slane %v1167, %v1940
    %v1942 = vsel %vm1378, %v1941, %v1937
    %v1943 = vlaneseq
    %v1944 = vshrl.u32 %v1943, 7
    %v1945 = vsub.s32 %v1380, %v1944
    %v1946 = vrot.slane %v1169, %v1945
    %v1947 = vsel %vm1385, %v1946, %v1942
    %v1948 = vlaneseq
    %v1949 = vshrl.u32 %v1948, 7
    %v1950 = vsub.s32 %v1387, %v1949
    %v1951 = vrot.slane %v1171, %v1950
    %v1952 = vsel %vm1392, %v1951, %v1947
    %v1953 = vlaneseq
    %v1954 = vshrl.u32 %v1953, 7
    %v1955 = vsub.s32 %v1394, %v1954
    %v1956 = vrot.slane %v1173, %v1955
    %v1957 = vsel %vm1399, %v1956, %v1952
    %v1958 = vlaneseq
    %v1959 = vshrl.u32 %v1958, 7
    %v1960 = vsub.s32 %v1401, %v1959
    %v1961 = vrot.slane %v1175, %v1960
    %v1962 = vsel %vm1406, %v1961, %v1957
    %v1963 = vlaneseq
    %v1964 = vshrl.u32 %v1963, 7
    %v1965 = vsub.s32 %v1408, %v1964
    %v1966 = vrot.slane %v1177, %v1965
    %v1967 = vsel %vm1413, %v1966, %v1962
    %vm1968 = vcmask 1041409
    %v1969 = vsel %vm1968, %v1493, %v1414
    %vm1970 = vcmask 1042434
    %v1971 = vsel %vm1970, %v1572, %v1969
    %vm1972 = vcmask 1043459
    %v1973 = vsel %vm1972, %v1651, %v1971
    %vm1974 = vcmask 1044484
    %v1975 = vsel %vm1974, %v1730, %v1973
    %vm1976 = vcmask 1045509
    %v1977 = vsel %vm1976, %v1809, %v1975
    %vm1978 = vcmask 1046534
    %v1979 = vsel %vm1978, %v1888, %v1977
    %vm1980 = vcmask 1047559
    %v1981 = vsel %vm1980, %v1967, %v1979
    %1983 = vst [vmem:[#allocation7] sm:$0xff] %v1981
    // Predicated region
    $region18: #{tpu_custom_call.1} parent=1 // pred_check
      _
    $region19: #{tpu_custom_call.1} parent=1 // pred_check_branch
      %1985 = sbr.rel (0) target = $region21
    $region20: #{tpu_custom_call.1} parent=1 // pred_region
      %s1987 = ssub.s32 128, 128
      %1988 = vsyncadd [#allocation4], %s1987
      %s1990 = sshll.u32 [#allocation7], 4
      %s1991 = int_to_ptr.vmem [resolvable:$true] %s1990
      %1993 = dma.vmem_to_hbm [thread:$0]  %s1991, 128, %s2, [#allocation4]
    $region21: #{tpu_custom_call.1} parent=1 // pred_fallthru
      _
    // Predicated region
    $region22: #{tpu_custom_call.1} parent=1 // pred_check
      _
    $region23: #{tpu_custom_call.1} parent=1 // pred_check_branch
      %1995 = sbr.rel (0) target = $region25
    $region24: #{tpu_custom_call.1} parent=1 // pred_region
      %1996 = dma.done [#allocation4], 128
    $region25: #{tpu_custom_call.1} parent=1 // pred_fallthru
      _
    %1997 = vsyncpa [#allocation3], 1
    %1998 = vsyncpa [#allocation6], 1
    %1999 = vsyncpa [#allocation4], 1

</llo_original>
